<compile_context>
chip_gen: v5e
topology: v5e:2x2
jax: 0.10.0
libtpu: 0.0.40
codegen_flags: <defaults>
</compile_context>

<pallas_src>
import math

import numpy as np
import jax
import jax.numpy as jnp
from jax import lax
from jax.experimental import pallas as pl
from jax.experimental.pallas import tpu as pltpu


# ----------------------------------------------------------------------------
# Deterministic parameter setup (replaces the Python `random` draws)
# ----------------------------------------------------------------------------
def _burn_intensity(bi, burning_min=0.0, burning_max=0.9):
    lo = burning_min + bi * 0.3
    hi = min(burning_min + bi * 0.6, burning_max)
    return 0.5 * (lo + hi)  # midpoint of uniform(lo, hi)


_SPOTS = [  # fixed "random" burn spots (r, theta, radius, intensity, falloff, mode, ellipse)
    dict(r=0.5, th=0.7, radius=0.15, inten=0.8, falloff=2.0, mode="exp", ell=None),
    dict(r=0.8, th=2.4, radius=0.20, inten=0.9, falloff=1.5, mode="quad", ell=(1.2, 0.7)),
    dict(r=0.4, th=4.0, radius=0.10, inten=0.7, falloff=2.5, mode="exp", ell=None),
    dict(r=0.9, th=5.5, radius=0.25, inten=1.0, falloff=1.2, mode="quad", ell=None),
]

_OVEN = dict(  # fixed OvenEffect draws (effects = ['steam', 'warmth', 'lighting'])
    strength=0.75,
    steam_opacity=0.2, steam_noise_scale=0.5, steam_sigma=8.0,
    warmth=0.1,
    light_intensity=0.175, light_x=0.1, light_y=-0.2, light_radius=0.6,
)

NUM_SEGMENTS = 6
PIZZA_RADIUS = 0.8
EDGE_THRESHOLD = 0.7
EDGE_W = 0.7   # 'random' pattern edge weight
SPOT_W = 0.8   # 'random' pattern spot weight (streak weight fixed to 0)

SEG_PARAMS = []
for _i, (_bi, _pat, _oven_on, _tex, _side) in enumerate([
    (0.90, "random", True,  True,  None),
    (0.05, "edge",   False, False, None),      # burn skipped (<= 0.1), no oven -> identity
    (0.60, "edge",   True,  True,  "left"),
    (0.30, "spot",   False, False, None),
    (0.75, "random", True,  True,  None),
    (0.50, "spot",   False, True,  None),
]):
    SEG_PARAMS.append(dict(
        burn=_bi,
        pattern=_pat,
        burn_intensity=_burn_intensity(_bi),
        edge_side=_side,
        edge_side_factor=1.35,
        texture=_tex,
        oven=_oven_on,
    ))

_BURN_LEVELS = (0.25, 0.5, 0.75, 1.0)
_BURN_COLORS = ((0.65, 0.40, 0.25), (0.35, 0.20, 0.15),
                (0.35, 0.20, 0.15), (0.15, 0.10, 0.10))


# ----------------------------------------------------------------------------
# Wrapper-side helpers (pre-pass only, never inside the kernel)
# ----------------------------------------------------------------------------
def _spot_mask(xc, yc):
    sm = None
    for s in _SPOTS:
        sx = s["r"] * math.cos(s["th"])
        sy = s["r"] * math.sin(s["th"])
        if s["ell"] is not None:
            xs_, ys_ = s["ell"]
            dx = (xc - sx) * (1.0 / xs_)
            dy = (yc - sy) * (1.0 / ys_)
        else:
            dx = xc - sx
            dy = yc - sy
        sd2 = dx * dx + dy * dy
        if s["mode"] == "exp":
            m = jnp.exp(-jnp.sqrt(sd2) * (s["falloff"] / s["radius"])) * s["inten"]
        else:  # 'quad' mode: compare squared distance -> no sqrt needed
            m = jnp.maximum(0.0, 1.0 - sd2 * (1.0 / (s["radius"] * s["radius"]))) * s["inten"]
        sm = m if sm is None else jnp.maximum(sm, m)
    return sm


def _gaussian_blur_separable(x, ksize, sigma):
    """Separable 1-D Gaussian blur with 'reflect' padding (matches TVF.gaussian_blur),
    O(H*W*ksize) instead of dense HxH / WxW matmuls."""
    half = (ksize - 1) // 2
    t = np.arange(ksize, dtype=np.float64) - half
    w = np.exp(-0.5 * (t / sigma) ** 2)
    w /= w.sum()
    w = jnp.asarray(w, jnp.float32)
    xp = jnp.pad(x, ((half, half), (0, 0)), mode="reflect")
    x = lax.conv_general_dilated(xp[None, None], w[None, None, :, None],
                                 window_strides=(1, 1), padding="VALID")[0, 0]
    xp = jnp.pad(x, ((0, 0), (half, half)), mode="reflect")
    x = lax.conv_general_dilated(xp[None, None], w[None, None, None, :],
                                 window_strides=(1, 1), padding="VALID")[0, 0]
    return x


# ----------------------------------------------------------------------------
# Fused Pallas kernel: all 6 segments, effect chains applied once
# ----------------------------------------------------------------------------
def make_fused_kernel(H, W, TH, TW):
    seg_size = 2.0 * math.pi / NUM_SEGMENTS
    # one boundary ray per segment start angle; adjacent wedges share a ray
    ray_sc = [(math.sin(k * seg_size), math.cos(k * seg_size)) for k in range(NUM_SEGMENTS)]

    sy_c = 2.0 / (H - 1)          # torch.linspace(-1, 1, h) step
    sx_c = 2.0 / (W - 1)          # torch.linspace(-1, 1, w) step
    strength = _OVEN["strength"]
    warmth_c = _OVEN["warmth"] * strength
    light_c = _OVEN["light_intensity"] * strength
    lx, ly = _OVEN["light_x"], _OVEN["light_y"]
    inv_2lr2 = 1.0 / (2.0 * _OVEN["light_radius"] ** 2)

    def kernel(img_ref, edge_ref, spot_ref, rand_ref, nt_ref, sm_ref, out_ref):
        # global pixel coordinates of this tile
        row0 = pl.program_id(0) * TH
        col0 = pl.program_id(1) * TW
        ii = (lax.broadcasted_iota(jnp.int32, (TH, TW), 0) + row0).astype(jnp.float32)
        jj = (lax.broadcasted_iota(jnp.int32, (TH, TW), 1) + col0).astype(jnp.float32)
        yc = ii * sy_c - 1.0
        xc = jj * sx_c - 1.0
        d2 = xc * xc + yc * yc
        dist = jnp.sqrt(d2)
        inside = dist <= PIZZA_RADIUS

        # ---- wedge membership: 6 shared ray sign tests (each ray used by 2 wedges)
        ge = []
        for k in range(NUM_SEGMENTS):
            s, c = ray_sc[k]
            ge.append(c * yc - s * xc >= 0.0)

        def wedge(i):
            return ge[i] & jnp.logical_not(ge[(i + 1) % NUM_SEGMENTS]) & inside

        # ---- build per-pixel burn mask / intensity and the effect select masks
        edge = edge_ref[...]
        spot = spot_ref[...]
        randb = rand_ref[...]
        zero = jnp.zeros_like(edge)
        false = jnp.zeros_like(inside)

        bm = zero          # per-pixel burn mask (pattern base x segment burn intensity)
        bi = zero          # per-pixel burn intensity (segment constant)
        sel_burn = false
        sel_tex = false
        sel_oven = false

        for i, p in enumerate(SEG_PARAMS):
            do_burn = p["burn"] > 0.1
            if not do_burn and not p["oven"]:
                continue  # identity segment
            wi = wedge(i)
            if i == 0:
                # exact image center (atan2(0,0)==0 in the reference) -> segment 0
                wi = wi | (inside & (d2 == 0.0))
            if do_burn:
                if p["pattern"] == "edge":
                    base = edge
                    if p["edge_side"] is not None:
                        cond = {"left": xc < -0.3, "right": xc > 0.3,
                                "top": yc < -0.3, "bottom": yc > 0.3}[p["edge_side"]]
                        base = jnp.where(cond, base * p["edge_side_factor"], base)
                elif p["pattern"] == "spot":
                    base = spot
                else:  # 'random'
                    base = randb
                    # TODO(synk): 'streak' burn pattern (its weight is fixed to 0 here)
                bm = jnp.where(wi, base * p["burn_intensity"], bm)
                bi = jnp.where(wi, p["burn_intensity"], bi)
                sel_burn = sel_burn | wi
                if p["texture"]:
                    sel_tex = sel_tex | wi
            if p["oven"]:
                sel_oven = sel_oven | wi

        r0 = img_ref[0]
        g0 = img_ref[1]
        b0 = img_ref[2]

        # ------------------ PizzaBurningEffect: applied ONCE ------------------
        rr, gg, bb = r0, g0, b0
        for level, col in zip(_BURN_LEVELS, _BURN_COLORS):
            lmsk = (bm > level * 0.8) & (bm <= level)
            bf = bi * level
            rr = jnp.where(lmsk, r0 + bf * (col[0] - r0), rr)
            gg = jnp.where(lmsk, g0 + bf * (col[1] - g0), gg)
            bb = jnp.where(lmsk, b0 + bf * (col[2] - b0), bb)

        cm = bm > 0.8  # charred
        rr = jnp.where(cm, 0.05, rr)
        gg = jnp.where(cm, 0.05, gg)
        bb = jnp.where(cm, 0.05, bb)

        one_plus_tn = 1.0 + nt_ref[...] * 0.05
        tmask = (bm > 0.3) & sel_tex
        rr = jnp.where(tmask, rr * one_plus_tn, rr)
        gg = jnp.where(tmask, gg * one_plus_tn, gg)
        bb = jnp.where(tmask, bb * one_plus_tn, bb)

        r1 = jnp.where(sel_burn, jnp.clip(rr, 0.0, 1.0), r0)
        g1 = jnp.where(sel_burn, jnp.clip(gg, 0.0, 1.0), g0)
        b1 = jnp.where(sel_burn, jnp.clip(bb, 0.0, 1.0), b0)

        # ------------------ OvenEffect: applied ONCE (identical params) ------------------
        sm = sm_ref[...]                       # pre-blurred & scaled steam mask
        one_m_sm = 1.0 - sm
        wf = warmth_c * (jnp.exp(dist * -2.0) * 0.5 + 0.5)
        warm_r = 1.0 + wf
        warm_g = 1.0 + wf * 0.3
        warm_b = 1.0 - wf * 0.2
        dxl = xc - lx
        dyl = yc - ly
        lm = jnp.exp((dxl * dxl + dyl * dyl) * (-inv_2lr2)) * light_c
        one_m_lm = 1.0 - lm
        one_p_lm = 1.0 + lm
        # TODO(synk): 'shadow' oven effect not exercised by this fixed config

        def oven(ch, steam_col, warm_mul, light_col):
            v = ch * one_m_sm + steam_col * sm                         # steam
            v = jnp.clip(v * warm_mul, 0.0, 1.0)                       # warmth
            # lighting, fused with the final clamp
            return jnp.clip(v * one_m_lm + jnp.minimum(light_col * v * one_p_lm, 1.0),
                            0.0, 1.0)

        r2 = oven(r1, 1.0, warm_r, 1.05)
        g2 = oven(g1, 1.0, warm_g, 1.03)
        b2 = oven(b1, 1.05, warm_b, 1.00)

        out_ref[0] = jnp.where(sel_oven, r2, r1)
        out_ref[1] = jnp.where(sel_oven, g2, g1)
        out_ref[2] = jnp.where(sel_oven, b2, b1)

    return kernel


# ----------------------------------------------------------------------------
# Wrapper: pre-pass planes + hoisted steam blur + tiled pallas_call
# ----------------------------------------------------------------------------
def _pick_tile(n, align, cap):
    """Largest multiple of `align` <= cap that divides n; else the full extent."""
    if n <= cap:
        return n
    t = (cap // align) * align
    while t >= align:
        if n % t == 0:
            return t
        t -= align
    return n


@jax.jit
def pizza_segment_effect(img):
    """JAX/Pallas equivalent of PizzaSegmentEffect.forward with deterministic draws."""
    _, H, W = img.shape

    key = jax.random.PRNGKey(0)
    k_edge, k_tex, k_steam = jax.random.split(key, 3)
    # One noise plane of each kind, shared across segments (wedges are disjoint,
    # so per-pixel noise stays i.i.d. within every segment).
    ne = jax.random.normal(k_edge, (H, W), jnp.float32)    # edge-burn distance noise
    nt = jax.random.normal(k_tex, (H, W), jnp.float32)     # burn texture noise
    un = jax.random.uniform(k_steam, (H, W), jnp.float32)  # steam noise

    # full-image coordinates (same arithmetic as the kernel's iota-based coords)
    yc = jnp.arange(H, dtype=jnp.float32)[:, None] * (2.0 / (H - 1)) - 1.0
    xc = jnp.arange(W, dtype=jnp.float32)[None, :] * (2.0 / (W - 1)) - 1.0
    dist = jnp.sqrt(xc * xc + yc * yc)

    # Pre-pass: the global reductions the original normalizations need, plus the
    # base burn-mask planes themselves (needed here anyway -> pass them to the
    # kernel instead of re-deriving exp/sqrt mask math per pixel).
    ew = jnp.exp(3.0 * (dist + ne * 0.05 - EDGE_THRESHOLD))
    ew_min = jnp.min(ew)
    ew_rng = jnp.max(ew) - ew_min
    inv_rng = jnp.where(ew_rng > 0, 1.0 / ew_rng, 1.0)     # guard constant-field NaN
    edge_base = (ew - ew_min) * inv_rng
    spot_base = _spot_mask(xc, yc)
    comb = jnp.maximum(edge_base * EDGE_W, spot_base * SPOT_W)
    bm_max = jnp.max(comb)
    rand_base = comb * jnp.where(bm_max > 0, 1.0 / bm_max, 1.0)

    # Hoisted steam map: reflect-padded separable Gaussian blur (as in TVF.gaussian_blur).
    sigma = _OVEN["steam_sigma"]
    ksize = max(3, (int(sigma * 3) // 2 * 2 + 1) // 2 * 2 + 1)
    y_steam = 1.0 - jnp.arange(H, dtype=jnp.float32)[:, None] / (H - 1)  # linspace(1, 0, h)
    steam_base = y_steam * (un * _OVEN["steam_noise_scale"])
    steam = _gaussian_blur_separable(steam_base, ksize, sigma)
    steam = (steam * (_OVEN["steam_opacity"] * _OVEN["strength"])).astype(jnp.float32)

    planes = [edge_base.astype(jnp.float32), spot_base.astype(jnp.float32),
              rand_base.astype(jnp.float32), nt, steam]

    # ---- tiling: pad ragged large extents so blocks stay (8,128)-aligned and
    # output stores lane-dense; tiles capped at 256x512 (f32) with an explicit
    # VMEM limit that stays well under v7x's 64 MiB per-TensorCore VMEM.
    ROW_CAP, COL_CAP = 256, 512
    Hp = H if (H <= ROW_CAP or H % 8 == 0) else ((H + 7) // 8) * 8
    Wp = W if (W <= COL_CAP or W % 128 == 0) else ((W + 127) // 128) * 128
    img_p = img
    if Hp != H or Wp != W:
        img_p = jnp.pad(img, ((0, 0), (0, Hp - H), (0, Wp - W)))
        planes = [jnp.pad(p, ((0, Hp - H), (0, Wp - W))) for p in planes]

    TH = _pick_tile(Hp, 8, ROW_CAP)
    TW = _pick_tile(Wp, 128, COL_CAP)
    # v7x has 2 TensorCores: make sure the grid has >= 2 points when H permits.
    if (Hp // TH) * (Wp // TW) < 2:
        cand = (TH // 2) // 8 * 8
        while cand >= 8:
            if Hp % cand == 0:
                TH = cand
                break
            cand -= 8
    grid = (Hp // TH, Wp // TW)

    kern = make_fused_kernel(H, W, TH, TW)
    spec_img = pl.BlockSpec((3, TH, TW), lambda i, j: (0, i, j))
    spec_hw = pl.BlockSpec((TH, TW), lambda i, j: (i, j))

    out = pl.pallas_call(
        kern,
        out_shape=jax.ShapeDtypeStruct((3, Hp, Wp), jnp.float32),
        grid=grid,
        in_specs=[spec_img] + [spec_hw] * 5,
        out_specs=spec_img,
        input_output_aliases={0: 0},
        compiler_params=pltpu.CompilerParams(
            dimension_semantics=("parallel", "parallel"),
            vmem_limit_bytes=48 * 1024 * 1024),
    )(img_p, *planes)

    if Hp != H or Wp != W:
        out = out[:, :H, :W]
    return out


if __name__ == "__main__":
    H = W = 16
    key = jax.random.PRNGKey(0)
    img = jax.random.uniform(key, (3, H, W), jnp.float32)  # layout: CHW

    out = pizza_segment_effect(img)
    out = jax.block_until_ready(out)

    assert out.shape == (3, H, W) and out.dtype == jnp.float32
    assert bool(jnp.all(jnp.isfinite(out)))
    print("KERNEL_OK")
</pallas_src>

<mosaic_0001>
module attributes {stable_mosaic.version = 11 : i64} {
  func.func @kernel(%arg0: i32, %arg1: i32, %arg2: memref<3x8x16xf32, #tpu.memory_space<vmem>>, %arg3: memref<8x16xf32, #tpu.memory_space<vmem>>, %arg4: memref<8x16xf32, #tpu.memory_space<vmem>>, %arg5: memref<8x16xf32, #tpu.memory_space<vmem>>, %arg6: memref<8x16xf32, #tpu.memory_space<vmem>>, %arg7: memref<8x16xf32, #tpu.memory_space<vmem>>, %arg8: memref<3x8x16xf32, #tpu.memory_space<vmem>>) attributes {dimension_semantics = [#tpu.dimension_semantics<parallel>, #tpu.dimension_semantics<parallel>], iteration_bounds = array<i64: 2, 1>, scalar_prefetch = 0 : i64, scratch_operands = 0 : i64, tpu.core_type = #tpu.core_type<tc>, window_params = [{transform_indices = @transform_0, window_bounds = array<i64: 3, 8, 16>}, {transform_indices = @transform_1, window_bounds = array<i64: 8, 16>}, {transform_indices = @transform_2, window_bounds = array<i64: 8, 16>}, {transform_indices = @transform_3, window_bounds = array<i64: 8, 16>}, {transform_indices = @transform_4, window_bounds = array<i64: 8, 16>}, {transform_indices = @transform_5, window_bounds = array<i64: 8, 16>}, {transform_indices = @transform_6, window_bounds = array<i64: 3, 8, 16>}]} {
    %c8_i32 = arith.constant 8 : i32
    %0 = arith.muli %arg0, %c8_i32 : i32
    %c16_i32 = arith.constant 16 : i32
    %1 = arith.muli %arg1, %c16_i32 : i32
    %2 = tpu.iota {dimensions = array<i32: 0>} : vector<8x16xi32>
    %3 = vector.broadcast %0 : i32 to vector<8x16xi32>
    %4 = arith.addi %2, %3 : vector<8x16xi32>
    %5 = arith.sitofp %4 : vector<8x16xi32> to vector<8x16xf32>
    %6 = tpu.iota {dimensions = array<i32: 1>} : vector<8x16xi32>
    %7 = vector.broadcast %1 : i32 to vector<8x16xi32>
    %8 = arith.addi %6, %7 : vector<8x16xi32>
    %9 = arith.sitofp %8 : vector<8x16xi32> to vector<8x16xf32>
    %cst = arith.constant 0.13333334 : f32
    %10 = vector.broadcast %cst : f32 to vector<8x16xf32>
    %11 = arith.mulf %5, %10 : vector<8x16xf32>
    %cst_0 = arith.constant 1.000000e+00 : f32
    %12 = vector.broadcast %cst_0 : f32 to vector<8x16xf32>
    %13 = arith.subf %11, %12 : vector<8x16xf32>
    %cst_1 = arith.constant 0.13333334 : f32
    %14 = vector.broadcast %cst_1 : f32 to vector<8x16xf32>
    %15 = arith.mulf %9, %14 : vector<8x16xf32>
    %cst_2 = arith.constant 1.000000e+00 : f32
    %16 = vector.broadcast %cst_2 : f32 to vector<8x16xf32>
    %17 = arith.subf %15, %16 : vector<8x16xf32>
    %18 = arith.mulf %17, %17 : vector<8x16xf32>
    %19 = arith.mulf %13, %13 : vector<8x16xf32>
    %20 = arith.addf %18, %19 : vector<8x16xf32>
    %21 = math.sqrt %20 : vector<8x16xf32>
    %cst_3 = arith.constant 8.000000e-01 : f32
    %22 = vector.broadcast %cst_3 : f32 to vector<8x16xf32>
    %23 = arith.cmpf ole, %21, %22 : vector<8x16xf32>
    %cst_4 = arith.constant 1.000000e+00 : f32
    %24 = vector.broadcast %cst_4 : f32 to vector<8x16xf32>
    %25 = arith.mulf %24, %13 : vector<8x16xf32>
    %cst_5 = arith.constant 0.000000e+00 : f32
    %26 = vector.broadcast %cst_5 : f32 to vector<8x16xf32>
    %27 = arith.mulf %26, %17 : vector<8x16xf32>
    %28 = arith.subf %25, %27 : vector<8x16xf32>
    %cst_6 = arith.constant 0.000000e+00 : f32
    %29 = vector.broadcast %cst_6 : f32 to vector<8x16xf32>
    %30 = arith.cmpf oge, %28, %29 : vector<8x16xf32>
    %cst_7 = arith.constant 5.000000e-01 : f32
    %31 = vector.broadcast %cst_7 : f32 to vector<8x16xf32>
    %32 = arith.mulf %31, %13 : vector<8x16xf32>
    %cst_8 = arith.constant 0.866025388 : f32
    %33 = vector.broadcast %cst_8 : f32 to vector<8x16xf32>
    %34 = arith.mulf %33, %17 : vector<8x16xf32>
    %35 = arith.subf %32, %34 : vector<8x16xf32>
    %cst_9 = arith.constant 0.000000e+00 : f32
    %36 = vector.broadcast %cst_9 : f32 to vector<8x16xf32>
    %37 = arith.cmpf oge, %35, %36 : vector<8x16xf32>
    %cst_10 = arith.constant -5.000000e-01 : f32
    %38 = vector.broadcast %cst_10 : f32 to vector<8x16xf32>
    %39 = arith.mulf %38, %13 : vector<8x16xf32>
    %cst_11 = arith.constant 0.866025388 : f32
    %40 = vector.broadcast %cst_11 : f32 to vector<8x16xf32>
    %41 = arith.mulf %40, %17 : vector<8x16xf32>
    %42 = arith.subf %39, %41 : vector<8x16xf32>
    %cst_12 = arith.constant 0.000000e+00 : f32
    %43 = vector.broadcast %cst_12 : f32 to vector<8x16xf32>
    %44 = arith.cmpf oge, %42, %43 : vector<8x16xf32>
    %cst_13 = arith.constant -1.000000e+00 : f32
    %45 = vector.broadcast %cst_13 : f32 to vector<8x16xf32>
    %46 = arith.mulf %45, %13 : vector<8x16xf32>
    %cst_14 = arith.constant 1.22464685E-16 : f32
    %47 = vector.broadcast %cst_14 : f32 to vector<8x16xf32>
    %48 = arith.mulf %47, %17 : vector<8x16xf32>
    %49 = arith.subf %46, %48 : vector<8x16xf32>
    %cst_15 = arith.constant 0.000000e+00 : f32
    %50 = vector.broadcast %cst_15 : f32 to vector<8x16xf32>
    %51 = arith.cmpf oge, %49, %50 : vector<8x16xf32>
    %cst_16 = arith.constant -5.000000e-01 : f32
    %52 = vector.broadcast %cst_16 : f32 to vector<8x16xf32>
    %53 = arith.mulf %52, %13 : vector<8x16xf32>
    %cst_17 = arith.constant -0.866025388 : f32
    %54 = vector.broadcast %cst_17 : f32 to vector<8x16xf32>
    %55 = arith.mulf %54, %17 : vector<8x16xf32>
    %56 = arith.subf %53, %55 : vector<8x16xf32>
    %cst_18 = arith.constant 0.000000e+00 : f32
    %57 = vector.broadcast %cst_18 : f32 to vector<8x16xf32>
    %58 = arith.cmpf oge, %56, %57 : vector<8x16xf32>
    %cst_19 = arith.constant 5.000000e-01 : f32
    %59 = vector.broadcast %cst_19 : f32 to vector<8x16xf32>
    %60 = arith.mulf %59, %13 : vector<8x16xf32>
    %cst_20 = arith.constant -0.866025388 : f32
    %61 = vector.broadcast %cst_20 : f32 to vector<8x16xf32>
    %62 = arith.mulf %61, %17 : vector<8x16xf32>
    %63 = arith.subf %60, %62 : vector<8x16xf32>
    %cst_21 = arith.constant 0.000000e+00 : f32
    %64 = vector.broadcast %cst_21 : f32 to vector<8x16xf32>
    %65 = arith.cmpf oge, %63, %64 : vector<8x16xf32>
    %c0 = arith.constant 0 : index
    %c0_22 = arith.constant 0 : index
    %66 = vector.load %arg3[%c0, %c0_22] : memref<8x16xf32, #tpu.memory_space<vmem>>, vector<8x16xf32>
    %c0_23 = arith.constant 0 : index
    %c0_24 = arith.constant 0 : index
    %67 = vector.load %arg4[%c0_23, %c0_24] : memref<8x16xf32, #tpu.memory_space<vmem>>, vector<8x16xf32>
    %c0_25 = arith.constant 0 : index
    %c0_26 = arith.constant 0 : index
    %68 = vector.load %arg5[%c0_25, %c0_26] : memref<8x16xf32, #tpu.memory_space<vmem>>, vector<8x16xf32>
    %cst_27 = arith.constant 0.000000e+00 : f32
    %69 = vector.broadcast %cst_27 : f32 to vector<8x16xf32>
    %false = arith.constant false
    %70 = vector.broadcast %false : i1 to vector<8x16xi1>
    %cst_28 = arith.constant dense<true> : vector<8x16xi1>
    %71 = arith.xori %37, %cst_28 : vector<8x16xi1>
    %72 = arith.andi %30, %71 : vector<8x16xi1>
    %73 = arith.andi %72, %23 : vector<8x16xi1>
    %cst_29 = arith.constant 0.000000e+00 : f32
    %74 = vector.broadcast %cst_29 : f32 to vector<8x16xf32>
    %75 = arith.cmpf oeq, %20, %74 : vector<8x16xf32>
    %76 = arith.andi %23, %75 : vector<8x16xi1>
    %77 = arith.ori %73, %76 : vector<8x16xi1>
    %cst_30 = arith.constant 4.050000e-01 : f32
    %78 = vector.broadcast %cst_30 : f32 to vector<8x16xf32>
    %79 = arith.mulf %68, %78 : vector<8x16xf32>
    %80 = arith.select %77, %79, %69 : vector<8x16xi1>, vector<8x16xf32>
    %cst_31 = arith.constant 4.050000e-01 : f32
    %81 = vector.broadcast %cst_31 : f32 to vector<8x16xf32>
    %82 = arith.select %77, %81, %69 : vector<8x16xi1>, vector<8x16xf32>
    %83 = arith.ori %70, %77 : vector<8x16xi1>
    %84 = arith.ori %70, %77 : vector<8x16xi1>
    %85 = arith.ori %70, %77 : vector<8x16xi1>
    %cst_32 = arith.constant dense<true> : vector<8x16xi1>
    %86 = arith.xori %51, %cst_32 : vector<8x16xi1>
    %87 = arith.andi %44, %86 : vector<8x16xi1>
    %88 = arith.andi %87, %23 : vector<8x16xi1>
    %cst_33 = arith.constant -3.000000e-01 : f32
    %89 = vector.broadcast %cst_33 : f32 to vector<8x16xf32>
    %90 = arith.cmpf olt, %17, %89 : vector<8x16xf32>
    %cst_34 = arith.constant 1.350000e+00 : f32
    %91 = vector.broadcast %cst_34 : f32 to vector<8x16xf32>
    %92 = arith.mulf %66, %91 : vector<8x16xf32>
    %93 = arith.select %90, %92, %66 : vector<8x16xi1>, vector<8x16xf32>
    %cst_35 = arith.constant 2.700000e-01 : f32
    %94 = vector.broadcast %cst_35 : f32 to vector<8x16xf32>
    %95 = arith.mulf %93, %94 : vector<8x16xf32>
    %96 = arith.select %88, %95, %80 : vector<8x16xi1>, vector<8x16xf32>
    %cst_36 = arith.constant 2.700000e-01 : f32
    %97 = vector.broadcast %cst_36 : f32 to vector<8x16xf32>
    %98 = arith.select %88, %97, %82 : vector<8x16xi1>, vector<8x16xf32>
    %99 = arith.ori %83, %88 : vector<8x16xi1>
    %100 = arith.ori %84, %88 : vector<8x16xi1>
    %101 = arith.ori %85, %88 : vector<8x16xi1>
    %cst_37 = arith.constant dense<true> : vector<8x16xi1>
    %102 = arith.xori %58, %cst_37 : vector<8x16xi1>
    %103 = arith.andi %51, %102 : vector<8x16xi1>
    %104 = arith.andi %103, %23 : vector<8x16xi1>
    %cst_38 = arith.constant 1.350000e-01 : f32
    %105 = vector.broadcast %cst_38 : f32 to vector<8x16xf32>
    %106 = arith.mulf %67, %105 : vector<8x16xf32>
    %107 = arith.select %104, %106, %96 : vector<8x16xi1>, vector<8x16xf32>
    %cst_39 = arith.constant 1.350000e-01 : f32
    %108 = vector.broadcast %cst_39 : f32 to vector<8x16xf32>
    %109 = arith.select %104, %108, %98 : vector<8x16xi1>, vector<8x16xf32>
    %110 = arith.ori %99, %104 : vector<8x16xi1>
    %cst_40 = arith.constant dense<true> : vector<8x16xi1>
    %111 = arith.xori %65, %cst_40 : vector<8x16xi1>
    %112 = arith.andi %58, %111 : vector<8x16xi1>
    %113 = arith.andi %112, %23 : vector<8x16xi1>
    %cst_41 = arith.constant 3.375000e-01 : f32
    %114 = vector.broadcast %cst_41 : f32 to vector<8x16xf32>
    %115 = arith.mulf %68, %114 : vector<8x16xf32>
    %116 = arith.select %113, %115, %107 : vector<8x16xi1>, vector<8x16xf32>
    %cst_42 = arith.constant 3.375000e-01 : f32
    %117 = vector.broadcast %cst_42 : f32 to vector<8x16xf32>
    %118 = arith.select %113, %117, %109 : vector<8x16xi1>, vector<8x16xf32>
    %119 = arith.ori %110, %113 : vector<8x16xi1>
    %120 = arith.ori %100, %113 : vector<8x16xi1>
    %121 = arith.ori %101, %113 : vector<8x16xi1>
    %cst_43 = arith.constant dense<true> : vector<8x16xi1>
    %122 = arith.xori %30, %cst_43 : vector<8x16xi1>
    %123 = arith.andi %65, %122 : vector<8x16xi1>
    %124 = arith.andi %123, %23 : vector<8x16xi1>
    %cst_44 = arith.constant 2.250000e-01 : f32
    %125 = vector.broadcast %cst_44 : f32 to vector<8x16xf32>
    %126 = arith.mulf %67, %125 : vector<8x16xf32>
    %127 = arith.select %124, %126, %116 : vector<8x16xi1>, vector<8x16xf32>
    %cst_45 = arith.constant 2.250000e-01 : f32
    %128 = vector.broadcast %cst_45 : f32 to vector<8x16xf32>
    %129 = arith.select %124, %128, %118 : vector<8x16xi1>, vector<8x16xf32>
    %130 = arith.ori %119, %124 : vector<8x16xi1>
    %131 = arith.ori %120, %124 : vector<8x16xi1>
    %c0_46 = arith.constant 0 : index
    %c0_47 = arith.constant 0 : index
    %c0_48 = arith.constant 0 : index
    %132 = vector.load %arg2[%c0_46, %c0_47, %c0_48] : memref<3x8x16xf32, #tpu.memory_space<vmem>>, vector<1x8x16xf32>
    %133 = vector.shape_cast %132 : vector<1x8x16xf32> to vector<8x16xf32>
    %c1 = arith.constant 1 : index
    %c0_49 = arith.constant 0 : index
    %c0_50 = arith.constant 0 : index
    %134 = vector.load %arg2[%c1, %c0_49, %c0_50] : memref<3x8x16xf32, #tpu.memory_space<vmem>>, vector<1x8x16xf32>
    %135 = vector.shape_cast %134 : vector<1x8x16xf32> to vector<8x16xf32>
    %c2 = arith.constant 2 : index
    %c0_51 = arith.constant 0 : index
    %c0_52 = arith.constant 0 : index
    %136 = vector.load %arg2[%c2, %c0_51, %c0_52] : memref<3x8x16xf32, #tpu.memory_space<vmem>>, vector<1x8x16xf32>
    %137 = vector.shape_cast %136 : vector<1x8x16xf32> to vector<8x16xf32>
    %cst_53 = arith.constant 2.000000e-01 : f32
    %138 = vector.broadcast %cst_53 : f32 to vector<8x16xf32>
    %139 = arith.cmpf ogt, %127, %138 : vector<8x16xf32>
    %cst_54 = arith.constant 2.500000e-01 : f32
    %140 = vector.broadcast %cst_54 : f32 to vector<8x16xf32>
    %141 = arith.cmpf ole, %127, %140 : vector<8x16xf32>
    %142 = arith.andi %139, %141 : vector<8x16xi1>
    %cst_55 = arith.constant 2.500000e-01 : f32
    %143 = vector.broadcast %cst_55 : f32 to vector<8x16xf32>
    %144 = arith.mulf %129, %143 : vector<8x16xf32>
    %cst_56 = arith.constant 6.500000e-01 : f32
    %145 = vector.broadcast %cst_56 : f32 to vector<8x16xf32>
    %146 = arith.subf %145, %133 : vector<8x16xf32>
    %147 = arith.mulf %144, %146 : vector<8x16xf32>
    %148 = arith.addf %133, %147 : vector<8x16xf32>
    %149 = arith.select %142, %148, %133 : vector<8x16xi1>, vector<8x16xf32>
    %cst_57 = arith.constant 4.000000e-01 : f32
    %150 = vector.broadcast %cst_57 : f32 to vector<8x16xf32>
    %151 = arith.subf %150, %135 : vector<8x16xf32>
    %152 = arith.mulf %144, %151 : vector<8x16xf32>
    %153 = arith.addf %135, %152 : vector<8x16xf32>
    %154 = arith.select %142, %153, %135 : vector<8x16xi1>, vector<8x16xf32>
    %cst_58 = arith.constant 2.500000e-01 : f32
    %155 = vector.broadcast %cst_58 : f32 to vector<8x16xf32>
    %156 = arith.subf %155, %137 : vector<8x16xf32>
    %157 = arith.mulf %144, %156 : vector<8x16xf32>
    %158 = arith.addf %137, %157 : vector<8x16xf32>
    %159 = arith.select %142, %158, %137 : vector<8x16xi1>, vector<8x16xf32>
    %cst_59 = arith.constant 4.000000e-01 : f32
    %160 = vector.broadcast %cst_59 : f32 to vector<8x16xf32>
    %161 = arith.cmpf ogt, %127, %160 : vector<8x16xf32>
    %cst_60 = arith.constant 5.000000e-01 : f32
    %162 = vector.broadcast %cst_60 : f32 to vector<8x16xf32>
    %163 = arith.cmpf ole, %127, %162 : vector<8x16xf32>
    %164 = arith.andi %161, %163 : vector<8x16xi1>
    %cst_61 = arith.constant 5.000000e-01 : f32
    %165 = vector.broadcast %cst_61 : f32 to vector<8x16xf32>
    %166 = arith.mulf %129, %165 : vector<8x16xf32>
    %cst_62 = arith.constant 3.500000e-01 : f32
    %167 = vector.broadcast %cst_62 : f32 to vector<8x16xf32>
    %168 = arith.subf %167, %133 : vector<8x16xf32>
    %169 = arith.mulf %166, %168 : vector<8x16xf32>
    %170 = arith.addf %133, %169 : vector<8x16xf32>
    %171 = arith.select %164, %170, %149 : vector<8x16xi1>, vector<8x16xf32>
    %cst_63 = arith.constant 2.000000e-01 : f32
    %172 = vector.broadcast %cst_63 : f32 to vector<8x16xf32>
    %173 = arith.subf %172, %135 : vector<8x16xf32>
    %174 = arith.mulf %166, %173 : vector<8x16xf32>
    %175 = arith.addf %135, %174 : vector<8x16xf32>
    %176 = arith.select %164, %175, %154 : vector<8x16xi1>, vector<8x16xf32>
    %cst_64 = arith.constant 1.500000e-01 : f32
    %177 = vector.broadcast %cst_64 : f32 to vector<8x16xf32>
    %178 = arith.subf %177, %137 : vector<8x16xf32>
    %179 = arith.mulf %166, %178 : vector<8x16xf32>
    %180 = arith.addf %137, %179 : vector<8x16xf32>
    %181 = arith.select %164, %180, %159 : vector<8x16xi1>, vector<8x16xf32>
    %cst_65 = arith.constant 6.000000e-01 : f32
    %182 = vector.broadcast %cst_65 : f32 to vector<8x16xf32>
    %183 = arith.cmpf ogt, %127, %182 : vector<8x16xf32>
    %cst_66 = arith.constant 7.500000e-01 : f32
    %184 = vector.broadcast %cst_66 : f32 to vector<8x16xf32>
    %185 = arith.cmpf ole, %127, %184 : vector<8x16xf32>
    %186 = arith.andi %183, %185 : vector<8x16xi1>
    %cst_67 = arith.constant 7.500000e-01 : f32
    %187 = vector.broadcast %cst_67 : f32 to vector<8x16xf32>
    %188 = arith.mulf %129, %187 : vector<8x16xf32>
    %cst_68 = arith.constant 3.500000e-01 : f32
    %189 = vector.broadcast %cst_68 : f32 to vector<8x16xf32>
    %190 = arith.subf %189, %133 : vector<8x16xf32>
    %191 = arith.mulf %188, %190 : vector<8x16xf32>
    %192 = arith.addf %133, %191 : vector<8x16xf32>
    %193 = arith.select %186, %192, %171 : vector<8x16xi1>, vector<8x16xf32>
    %cst_69 = arith.constant 2.000000e-01 : f32
    %194 = vector.broadcast %cst_69 : f32 to vector<8x16xf32>
    %195 = arith.subf %194, %135 : vector<8x16xf32>
    %196 = arith.mulf %188, %195 : vector<8x16xf32>
    %197 = arith.addf %135, %196 : vector<8x16xf32>
    %198 = arith.select %186, %197, %176 : vector<8x16xi1>, vector<8x16xf32>
    %cst_70 = arith.constant 1.500000e-01 : f32
    %199 = vector.broadcast %cst_70 : f32 to vector<8x16xf32>
    %200 = arith.subf %199, %137 : vector<8x16xf32>
    %201 = arith.mulf %188, %200 : vector<8x16xf32>
    %202 = arith.addf %137, %201 : vector<8x16xf32>
    %203 = arith.select %186, %202, %181 : vector<8x16xi1>, vector<8x16xf32>
    %cst_71 = arith.constant 8.000000e-01 : f32
    %204 = vector.broadcast %cst_71 : f32 to vector<8x16xf32>
    %205 = arith.cmpf ogt, %127, %204 : vector<8x16xf32>
    %cst_72 = arith.constant 1.000000e+00 : f32
    %206 = vector.broadcast %cst_72 : f32 to vector<8x16xf32>
    %207 = arith.cmpf ole, %127, %206 : vector<8x16xf32>
    %208 = arith.andi %205, %207 : vector<8x16xi1>
    %cst_73 = arith.constant 1.000000e+00 : f32
    %209 = vector.broadcast %cst_73 : f32 to vector<8x16xf32>
    %210 = arith.mulf %129, %209 : vector<8x16xf32>
    %cst_74 = arith.constant 1.500000e-01 : f32
    %211 = vector.broadcast %cst_74 : f32 to vector<8x16xf32>
    %212 = arith.subf %211, %133 : vector<8x16xf32>
    %213 = arith.mulf %210, %212 : vector<8x16xf32>
    %214 = arith.addf %133, %213 : vector<8x16xf32>
    %215 = arith.select %208, %214, %193 : vector<8x16xi1>, vector<8x16xf32>
    %cst_75 = arith.constant 1.000000e-01 : f32
    %216 = vector.broadcast %cst_75 : f32 to vector<8x16xf32>
    %217 = arith.subf %216, %135 : vector<8x16xf32>
    %218 = arith.mulf %210, %217 : vector<8x16xf32>
    %219 = arith.addf %135, %218 : vector<8x16xf32>
    %220 = arith.select %208, %219, %198 : vector<8x16xi1>, vector<8x16xf32>
    %cst_76 = arith.constant 1.000000e-01 : f32
    %221 = vector.broadcast %cst_76 : f32 to vector<8x16xf32>
    %222 = arith.subf %221, %137 : vector<8x16xf32>
    %223 = arith.mulf %210, %222 : vector<8x16xf32>
    %224 = arith.addf %137, %223 : vector<8x16xf32>
    %225 = arith.select %208, %224, %203 : vector<8x16xi1>, vector<8x16xf32>
    %cst_77 = arith.constant 8.000000e-01 : f32
    %226 = vector.broadcast %cst_77 : f32 to vector<8x16xf32>
    %227 = arith.cmpf ogt, %127, %226 : vector<8x16xf32>
    %cst_78 = arith.constant 5.000000e-02 : f32
    %228 = vector.broadcast %cst_78 : f32 to vector<8x16xf32>
    %229 = arith.select %227, %228, %215 : vector<8x16xi1>, vector<8x16xf32>
    %cst_79 = arith.constant 5.000000e-02 : f32
    %230 = vector.broadcast %cst_79 : f32 to vector<8x16xf32>
    %231 = arith.select %227, %230, %220 : vector<8x16xi1>, vector<8x16xf32>
    %cst_80 = arith.constant 5.000000e-02 : f32
    %232 = vector.broadcast %cst_80 : f32 to vector<8x16xf32>
    %233 = arith.select %227, %232, %225 : vector<8x16xi1>, vector<8x16xf32>
    %c0_81 = arith.constant 0 : index
    %c0_82 = arith.constant 0 : index
    %234 = vector.load %arg6[%c0_81, %c0_82] : memref<8x16xf32, #tpu.memory_space<vmem>>, vector<8x16xf32>
    %cst_83 = arith.constant 5.000000e-02 : f32
    %235 = vector.broadcast %cst_83 : f32 to vector<8x16xf32>
    %236 = arith.mulf %234, %235 : vector<8x16xf32>
    %cst_84 = arith.constant 1.000000e+00 : f32
    %237 = vector.broadcast %cst_84 : f32 to vector<8x16xf32>
    %238 = arith.addf %237, %236 : vector<8x16xf32>
    %cst_85 = arith.constant 3.000000e-01 : f32
    %239 = vector.broadcast %cst_85 : f32 to vector<8x16xf32>
    %240 = arith.cmpf ogt, %127, %239 : vector<8x16xf32>
    %241 = arith.andi %240, %131 : vector<8x16xi1>
    %242 = arith.mulf %229, %238 : vector<8x16xf32>
    %243 = arith.select %241, %242, %229 : vector<8x16xi1>, vector<8x16xf32>
    %244 = arith.mulf %231, %238 : vector<8x16xf32>
    %245 = arith.select %241, %244, %231 : vector<8x16xi1>, vector<8x16xf32>
    %246 = arith.mulf %233, %238 : vector<8x16xf32>
    %247 = arith.select %241, %246, %233 : vector<8x16xi1>, vector<8x16xf32>
    %cst_86 = arith.constant 0.000000e+00 : f32
    %cst_87 = arith.constant 1.000000e+00 : f32
    %248 = vector.broadcast %cst_86 : f32 to vector<8x16xf32>
    %249 = arith.maximumf %248, %243 : vector<8x16xf32>
    %250 = vector.broadcast %cst_87 : f32 to vector<8x16xf32>
    %251 = arith.minimumf %250, %249 : vector<8x16xf32>
    %252 = arith.select %130, %251, %133 : vector<8x16xi1>, vector<8x16xf32>
    %cst_88 = arith.constant 0.000000e+00 : f32
    %cst_89 = arith.constant 1.000000e+00 : f32
    %253 = vector.broadcast %cst_88 : f32 to vector<8x16xf32>
    %254 = arith.maximumf %253, %245 : vector<8x16xf32>
    %255 = vector.broadcast %cst_89 : f32 to vector<8x16xf32>
    %256 = arith.minimumf %255, %254 : vector<8x16xf32>
    %257 = arith.select %130, %256, %135 : vector<8x16xi1>, vector<8x16xf32>
    %cst_90 = arith.constant 0.000000e+00 : f32
    %cst_91 = arith.constant 1.000000e+00 : f32
    %258 = vector.broadcast %cst_90 : f32 to vector<8x16xf32>
    %259 = arith.maximumf %258, %247 : vector<8x16xf32>
    %260 = vector.broadcast %cst_91 : f32 to vector<8x16xf32>
    %261 = arith.minimumf %260, %259 : vector<8x16xf32>
    %262 = arith.select %130, %261, %137 : vector<8x16xi1>, vector<8x16xf32>
    %c0_92 = arith.constant 0 : index
    %c0_93 = arith.constant 0 : index
    %263 = vector.load %arg7[%c0_92, %c0_93] : memref<8x16xf32, #tpu.memory_space<vmem>>, vector<8x16xf32>
    %cst_94 = arith.constant 1.000000e+00 : f32
    %264 = vector.broadcast %cst_94 : f32 to vector<8x16xf32>
    %265 = arith.subf %264, %263 : vector<8x16xf32>
    %cst_95 = arith.constant -2.000000e+00 : f32
    %266 = vector.broadcast %cst_95 : f32 to vector<8x16xf32>
    %267 = arith.mulf %21, %266 : vector<8x16xf32>
    %268 = math.exp %267 : vector<8x16xf32>
    %cst_96 = arith.constant 5.000000e-01 : f32
    %269 = vector.broadcast %cst_96 : f32 to vector<8x16xf32>
    %270 = arith.mulf %268, %269 : vector<8x16xf32>
    %cst_97 = arith.constant 5.000000e-01 : f32
    %271 = vector.broadcast %cst_97 : f32 to vector<8x16xf32>
    %272 = arith.addf %270, %271 : vector<8x16xf32>
    %cst_98 = arith.constant 7.500000e-02 : f32
    %273 = vector.broadcast %cst_98 : f32 to vector<8x16xf32>
    %274 = arith.mulf %273, %272 : vector<8x16xf32>
    %cst_99 = arith.constant 1.000000e+00 : f32
    %275 = vector.broadcast %cst_99 : f32 to vector<8x16xf32>
    %276 = arith.addf %275, %274 : vector<8x16xf32>
    %cst_100 = arith.constant 3.000000e-01 : f32
    %277 = vector.broadcast %cst_100 : f32 to vector<8x16xf32>
    %278 = arith.mulf %274, %277 : vector<8x16xf32>
    %cst_101 = arith.constant 1.000000e+00 : f32
    %279 = vector.broadcast %cst_101 : f32 to vector<8x16xf32>
    %280 = arith.addf %279, %278 : vector<8x16xf32>
    %cst_102 = arith.constant 2.000000e-01 : f32
    %281 = vector.broadcast %cst_102 : f32 to vector<8x16xf32>
    %282 = arith.mulf %274, %281 : vector<8x16xf32>
    %cst_103 = arith.constant 1.000000e+00 : f32
    %283 = vector.broadcast %cst_103 : f32 to vector<8x16xf32>
    %284 = arith.subf %283, %282 : vector<8x16xf32>
    %cst_104 = arith.constant 1.000000e-01 : f32
    %285 = vector.broadcast %cst_104 : f32 to vector<8x16xf32>
    %286 = arith.subf %17, %285 : vector<8x16xf32>
    %cst_105 = arith.constant -2.000000e-01 : f32
    %287 = vector.broadcast %cst_105 : f32 to vector<8x16xf32>
    %288 = arith.subf %13, %287 : vector<8x16xf32>
    %289 = arith.mulf %286, %286 : vector<8x16xf32>
    %290 = arith.mulf %288, %288 : vector<8x16xf32>
    %291 = arith.addf %289, %290 : vector<8x16xf32>
    %cst_106 = arith.constant -1.38888884 : f32
    %292 = vector.broadcast %cst_106 : f32 to vector<8x16xf32>
    %293 = arith.mulf %291, %292 : vector<8x16xf32>
    %294 = math.exp %293 : vector<8x16xf32>
    %cst_107 = arith.constant 1.312500e-01 : f32
    %295 = vector.broadcast %cst_107 : f32 to vector<8x16xf32>
    %296 = arith.mulf %294, %295 : vector<8x16xf32>
    %cst_108 = arith.constant 1.000000e+00 : f32
    %297 = vector.broadcast %cst_108 : f32 to vector<8x16xf32>
    %298 = arith.subf %297, %296 : vector<8x16xf32>
    %cst_109 = arith.constant 1.000000e+00 : f32
    %299 = vector.broadcast %cst_109 : f32 to vector<8x16xf32>
    %300 = arith.addf %299, %296 : vector<8x16xf32>
    %301 = arith.mulf %252, %265 : vector<8x16xf32>
    %cst_110 = arith.constant 1.000000e+00 : f32
    %302 = vector.broadcast %cst_110 : f32 to vector<8x16xf32>
    %303 = arith.mulf %302, %263 : vector<8x16xf32>
    %304 = arith.addf %301, %303 : vector<8x16xf32>
    %305 = arith.mulf %304, %276 : vector<8x16xf32>
    %cst_111 = arith.constant 0.000000e+00 : f32
    %cst_112 = arith.constant 1.000000e+00 : f32
    %306 = vector.broadcast %cst_111 : f32 to vector<8x16xf32>
    %307 = arith.maximumf %306, %305 : vector<8x16xf32>
    %308 = vector.broadcast %cst_112 : f32 to vector<8x16xf32>
    %309 = arith.minimumf %308, %307 : vector<8x16xf32>
    %310 = arith.mulf %309, %298 : vector<8x16xf32>
    %cst_113 = arith.constant 1.050000e+00 : f32
    %311 = vector.broadcast %cst_113 : f32 to vector<8x16xf32>
    %312 = arith.mulf %311, %309 : vector<8x16xf32>
    %313 = arith.mulf %312, %300 : vector<8x16xf32>
    %cst_114 = arith.constant 1.000000e+00 : f32
    %314 = vector.broadcast %cst_114 : f32 to vector<8x16xf32>
    %315 = arith.minimumf %313, %314 : vector<8x16xf32>
    %316 = arith.addf %310, %315 : vector<8x16xf32>
    %cst_115 = arith.constant 0.000000e+00 : f32
    %cst_116 = arith.constant 1.000000e+00 : f32
    %317 = vector.broadcast %cst_115 : f32 to vector<8x16xf32>
    %318 = arith.maximumf %317, %316 : vector<8x16xf32>
    %319 = vector.broadcast %cst_116 : f32 to vector<8x16xf32>
    %320 = arith.minimumf %319, %318 : vector<8x16xf32>
    %321 = arith.mulf %257, %265 : vector<8x16xf32>
    %cst_117 = arith.constant 1.000000e+00 : f32
    %322 = vector.broadcast %cst_117 : f32 to vector<8x16xf32>
    %323 = arith.mulf %322, %263 : vector<8x16xf32>
    %324 = arith.addf %321, %323 : vector<8x16xf32>
    %325 = arith.mulf %324, %280 : vector<8x16xf32>
    %cst_118 = arith.constant 0.000000e+00 : f32
    %cst_119 = arith.constant 1.000000e+00 : f32
    %326 = vector.broadcast %cst_118 : f32 to vector<8x16xf32>
    %327 = arith.maximumf %326, %325 : vector<8x16xf32>
    %328 = vector.broadcast %cst_119 : f32 to vector<8x16xf32>
    %329 = arith.minimumf %328, %327 : vector<8x16xf32>
    %330 = arith.mulf %329, %298 : vector<8x16xf32>
    %cst_120 = arith.constant 1.030000e+00 : f32
    %331 = vector.broadcast %cst_120 : f32 to vector<8x16xf32>
    %332 = arith.mulf %331, %329 : vector<8x16xf32>
    %333 = arith.mulf %332, %300 : vector<8x16xf32>
    %cst_121 = arith.constant 1.000000e+00 : f32
    %334 = vector.broadcast %cst_121 : f32 to vector<8x16xf32>
    %335 = arith.minimumf %333, %334 : vector<8x16xf32>
    %336 = arith.addf %330, %335 : vector<8x16xf32>
    %cst_122 = arith.constant 0.000000e+00 : f32
    %cst_123 = arith.constant 1.000000e+00 : f32
    %337 = vector.broadcast %cst_122 : f32 to vector<8x16xf32>
    %338 = arith.maximumf %337, %336 : vector<8x16xf32>
    %339 = vector.broadcast %cst_123 : f32 to vector<8x16xf32>
    %340 = arith.minimumf %339, %338 : vector<8x16xf32>
    %341 = arith.mulf %262, %265 : vector<8x16xf32>
    %cst_124 = arith.constant 1.050000e+00 : f32
    %342 = vector.broadcast %cst_124 : f32 to vector<8x16xf32>
    %343 = arith.mulf %342, %263 : vector<8x16xf32>
    %344 = arith.addf %341, %343 : vector<8x16xf32>
    %345 = arith.mulf %344, %284 : vector<8x16xf32>
    %cst_125 = arith.constant 0.000000e+00 : f32
    %cst_126 = arith.constant 1.000000e+00 : f32
    %346 = vector.broadcast %cst_125 : f32 to vector<8x16xf32>
    %347 = arith.maximumf %346, %345 : vector<8x16xf32>
    %348 = vector.broadcast %cst_126 : f32 to vector<8x16xf32>
    %349 = arith.minimumf %348, %347 : vector<8x16xf32>
    %350 = arith.mulf %349, %298 : vector<8x16xf32>
    %cst_127 = arith.constant 1.000000e+00 : f32
    %351 = vector.broadcast %cst_127 : f32 to vector<8x16xf32>
    %352 = arith.mulf %351, %349 : vector<8x16xf32>
    %353 = arith.mulf %352, %300 : vector<8x16xf32>
    %cst_128 = arith.constant 1.000000e+00 : f32
    %354 = vector.broadcast %cst_128 : f32 to vector<8x16xf32>
    %355 = arith.minimumf %353, %354 : vector<8x16xf32>
    %356 = arith.addf %350, %355 : vector<8x16xf32>
    %cst_129 = arith.constant 0.000000e+00 : f32
    %cst_130 = arith.constant 1.000000e+00 : f32
    %357 = vector.broadcast %cst_129 : f32 to vector<8x16xf32>
    %358 = arith.maximumf %357, %356 : vector<8x16xf32>
    %359 = vector.broadcast %cst_130 : f32 to vector<8x16xf32>
    %360 = arith.minimumf %359, %358 : vector<8x16xf32>
    %361 = arith.select %121, %320, %252 : vector<8x16xi1>, vector<8x16xf32>
    %c0_131 = arith.constant 0 : index
    %c0_132 = arith.constant 0 : index
    %c0_133 = arith.constant 0 : index
    %362 = vector.load %arg8[%c0_131, %c0_132, %c0_133] : memref<3x8x16xf32, #tpu.memory_space<vmem>>, vector<1x8x16xf32>
    %363 = vector.shape_cast %362 : vector<1x8x16xf32> to vector<8x16xf32>
    %364 = vector.shape_cast %361 : vector<8x16xf32> to vector<1x8x16xf32>
    tpu.vector_store %arg8[%c0_131, %c0_132, %c0_133], %364 {strides = array<i32>} : memref<3x8x16xf32, #tpu.memory_space<vmem>>, vector<1x8x16xf32>,
    %365 = arith.select %121, %340, %257 : vector<8x16xi1>, vector<8x16xf32>
    %c1_134 = arith.constant 1 : index
    %c0_135 = arith.constant 0 : index
    %c0_136 = arith.constant 0 : index
    %366 = vector.load %arg8[%c1_134, %c0_135, %c0_136] : memref<3x8x16xf32, #tpu.memory_space<vmem>>, vector<1x8x16xf32>
    %367 = vector.shape_cast %366 : vector<1x8x16xf32> to vector<8x16xf32>
    %368 = vector.shape_cast %365 : vector<8x16xf32> to vector<1x8x16xf32>
    tpu.vector_store %arg8[%c1_134, %c0_135, %c0_136], %368 {strides = array<i32>} : memref<3x8x16xf32, #tpu.memory_space<vmem>>, vector<1x8x16xf32>,
    %369 = arith.select %121, %360, %262 : vector<8x16xi1>, vector<8x16xf32>
    %c2_137 = arith.constant 2 : index
    %c0_138 = arith.constant 0 : index
    %c0_139 = arith.constant 0 : index
    %370 = vector.load %arg8[%c2_137, %c0_138, %c0_139] : memref<3x8x16xf32, #tpu.memory_space<vmem>>, vector<1x8x16xf32>
    %371 = vector.shape_cast %370 : vector<1x8x16xf32> to vector<8x16xf32>
    %372 = vector.shape_cast %369 : vector<8x16xf32> to vector<1x8x16xf32>
    tpu.vector_store %arg8[%c2_137, %c0_138, %c0_139], %372 {strides = array<i32>} : memref<3x8x16xf32, #tpu.memory_space<vmem>>, vector<1x8x16xf32>,
    return
  }
  func.func @transform_0(%arg0: i32, %arg1: i32) -> (i32, i32, i32) {
    %c0_i32 = arith.constant 0 : i32
    %c0_i32_0 = arith.constant 0 : i32
    return %c0_i32, %arg0, %arg1 : i32, i32, i32
  }
  func.func @transform_1(%arg0: i32, %arg1: i32) -> (i32, i32) {
    %c0_i32 = arith.constant 0 : i32
    return %arg0, %arg1 : i32, i32
  }
  func.func @transform_2(%arg0: i32, %arg1: i32) -> (i32, i32) {
    %c0_i32 = arith.constant 0 : i32
    return %arg0, %arg1 : i32, i32
  }
  func.func @transform_3(%arg0: i32, %arg1: i32) -> (i32, i32) {
    %c0_i32 = arith.constant 0 : i32
    return %arg0, %arg1 : i32, i32
  }
  func.func @transform_4(%arg0: i32, %arg1: i32) -> (i32, i32) {
    %c0_i32 = arith.constant 0 : i32
    return %arg0, %arg1 : i32, i32
  }
  func.func @transform_5(%arg0: i32, %arg1: i32) -> (i32, i32) {
    %c0_i32 = arith.constant 0 : i32
    return %arg0, %arg1 : i32, i32
  }
  func.func @transform_6(%arg0: i32, %arg1: i32) -> (i32, i32, i32) {
    %c0_i32 = arith.constant 0 : i32
    %c0_i32_0 = arith.constant 0 : i32
    return %c0_i32, %arg0, %arg1 : i32, i32, i32
  }
}

</mosaic_0001>

<llo_original>
// kernel: pizza_segment_effect.3
$region0: #{pizza_segment_effect.3}
  #allocation0 [shape = 'u32[]', space=smem, size = 0x4, offset = 0x4, fixed_abs, tag = 'smem constant byte address 0x4 - core index']
  #allocation1 [shape = 'u32[72,128]{1,0:T(1,128)}', space=vmem, size = 0x9000, scoped, tag = 'internal scratch']
  %s0 = inlined_call_operand.hbm [shape: f32[3,16,16], index: 0, kind: input, shape index: {}, may-alias: {0,6}]
  %s1 = inlined_call_operand.vmem [shape: f32[16,16], index: 1, kind: input, shape index: {}]
  %s2 = inlined_call_operand.vmem [shape: f32[16,16], index: 2, kind: input, shape index: {}]
  %s3 = inlined_call_operand.vmem [shape: f32[16,16], index: 3, kind: input, shape index: {}]
  %s4 = inlined_call_operand.vmem [shape: f32[16,16], index: 4, kind: input, shape index: {}]
  %s5 = inlined_call_operand.vmem [shape: f32[16,16], index: 5, kind: input, shape index: {}]
  %s6 = inlined_call_operand.hbm [shape: f32[3,16,16], index: 6, kind: output, shape index: {}, may-alias: {0,6}]
  %s7 = sld [smem:[#allocation0]]
  $region61: #{pizza_segment_effect.3} parent=0
    _
  %s9 = ssub.s32 1, %s7
  %s10 = scalar_select 0, %s9, %s7
  $region1: #{pizza_segment_effect.3} parent=0
    #allocation2 [shape = 'u8[24576]{0}', space=vmem, size = 0x6000, scoped, tag = 'input window, operand 0']
    #allocation3 [shape = 's32[2]{0}', space=sflag, size = 0x8, scoped, tag = 'scoped memory for pizza_segment_effect.3']
    #allocation4 [shape = 's32[2]{0}', space=sflag, size = 0x8, scoped, tag = 'scoped memory for pizza_segment_effect.3']
    #allocation5 [shape = 'u8[24576]{0}', space=vmem, size = 0x6000, scoped, tag = 'output window, operand 0']
    %11 = vsyncpa [#allocation3], 0
    %s12 = scalar_lea.sflag [#allocation3], 1
    %13 = vsyncpa %s12, 0
    %14 = vsyncpa [#allocation4], 0
    %s15 = scalar_lea.sflag [#allocation4], 1
    %16 = vsyncpa %s15, 0
    loop: start=0, step=1, limit=4
    $region2: #{pizza_segment_effect.3} parent=1 // loop_pre_header
      _
    $region3: #{pizza_segment_effect.3} parent=1 // loop_header
      %s18 = sphi 0, %s22
      %p19 = scmp.ge.s32.totalorder %s18, 4
      %s25 = sphi 0, %s37
      %s26 = sphi 0, %s33
      %s27 = sphi 0, %s25
      %s28 = sphi 0, %s26
      %s29 = sphi 0, %s27
      %s30 = sphi 0, %s28
      %s42 = sphi 0, %s44
      %s45 = sphi 0, %s42
      %s46 = sphi 0, %s45
      %s62 = sphi 0, %s46
      %s70 = sphi 0, %s72
      %s73 = sphi 0, %s70
      %s74 = sphi 0, %s73
      %s90 = sphi 0, %s74
      %s98 = sphi 0, %s100
      %s101 = sphi 0, %s98
      %s102 = sphi 0, %s101
      %s118 = sphi 0, %s102
      %s126 = sphi 0, %s128
      %s129 = sphi 0, %s126
      %s130 = sphi 0, %s129
      %s146 = sphi 0, %s130
      %s154 = sphi 0, %s156
      %s157 = sphi 0, %s154
      %s158 = sphi 0, %s157
      %s174 = sphi 0, %s158
      %s182 = sphi 0, %s184
      %s185 = sphi 0, %s182
      %s186 = sphi 0, %s185
      %s202 = sphi 0, %s186
      %s210 = sphi 0, %s212
      %s213 = sphi 0, %s210
      %s214 = sphi 0, %s213
      %s230 = sphi 0, %s214
    $region4: #{pizza_segment_effect.3} parent=1 // loop_header_branch
      %21 = sbr.rel (%p19) target = $region8
    $region5: #{pizza_segment_effect.3} parent=1 // loop_body
      %s23 = ssub.s32 %s18, 1
      %s24 = ssub.s32 %s18, 2
      %s31 = sadd.s32 1, %s26
      %p32 = scmp.ge.s32.totalorder %s31, 1
      %s33 = scalar_select %p32, 0, %s31
      %s34 = sadd.s32 1, %s25
      %s35 = scalar_select %p32, %s34, %s25
      %p36 = scmp.ge.s32.totalorder %s35, 2
      %s37 = scalar_select %p36, 0, %s35
      %s38 = ssub.s32 %s25, %s37
      %s39 = ssub.s32 %s26, %s33
      %s40 = sor.u32 %s38, %s39
      %p41 = scmp.eq.s32.totalorder %s40, 0
      %s43 = sadd.s32 %s42, 1
      %s44 = scalar_select %p41, %s42, %s43
      %p47 = pneg %p41
      %p48 = scmp.eq.s32.totalorder %s18, 1
      %p49 = por %p47, %p48
      %p50 = scmp.ne.s32.totalorder %s42, %s45
      %p51 = scmp.eq.s32.totalorder %s18, 0
      %p52 = por %p50, %p51
      %p53 = scmp.ne.s32.totalorder %s42, %s45
      %p54 = scmp.eq.s32.totalorder %s23, 1
      %p55 = por %p53, %p54
      %p56 = scmp.ne.s32.totalorder %s45, %s46
      %p57 = scmp.eq.s32.totalorder %s23, 0
      %p58 = por %p56, %p57
      %p59 = scmp.ne.s32.totalorder %s45, %s46
      %p60 = scmp.eq.s32.totalorder %s24, 1
      %p61 = por %p59, %p60
      %p63 = scmp.ne.s32.totalorder %s46, %s62
      %p64 = scmp.eq.s32.totalorder %s24, 0
      %p65 = por %p63, %p64
      %s66 = ssub.s32 %s25, %s37
      %s67 = ssub.s32 %s26, %s33
      %s68 = sor.u32 %s66, %s67
      %p69 = scmp.eq.s32.totalorder %s68, 0
      %s71 = sadd.s32 %s70, 1
      %s72 = scalar_select %p69, %s70, %s71
      %p75 = pneg %p69
      %p76 = scmp.eq.s32.totalorder %s18, 1
      %p77 = por %p75, %p76
      %p78 = scmp.ne.s32.totalorder %s70, %s73
      %p79 = scmp.eq.s32.totalorder %s18, 0
      %p80 = por %p78, %p79
      %p81 = scmp.ne.s32.totalorder %s70, %s73
      %p82 = scmp.eq.s32.totalorder %s23, 1
      %p83 = por %p81, %p82
      %p84 = scmp.ne.s32.totalorder %s73, %s74
      %p85 = scmp.eq.s32.totalorder %s23, 0
      %p86 = por %p84, %p85
      %p87 = scmp.ne.s32.totalorder %s73, %s74
      %p88 = scmp.eq.s32.totalorder %s24, 1
      %p89 = por %p87, %p88
      %p91 = scmp.ne.s32.totalorder %s74, %s90
      %p92 = scmp.eq.s32.totalorder %s24, 0
      %p93 = por %p91, %p92
      %s94 = ssub.s32 %s25, %s37
      %s95 = ssub.s32 %s26, %s33
      %s96 = sor.u32 %s94, %s95
      %p97 = scmp.eq.s32.totalorder %s96, 0
      %s99 = sadd.s32 %s98, 1
      %s100 = scalar_select %p97, %s98, %s99
      %p103 = pneg %p97
      %p104 = scmp.eq.s32.totalorder %s18, 1
      %p105 = por %p103, %p104
      %p106 = scmp.ne.s32.totalorder %s98, %s101
      %p107 = scmp.eq.s32.totalorder %s18, 0
      %p108 = por %p106, %p107
      %p109 = scmp.ne.s32.totalorder %s98, %s101
      %p110 = scmp.eq.s32.totalorder %s23, 1
      %p111 = por %p109, %p110
      %p112 = scmp.ne.s32.totalorder %s101, %s102
      %p113 = scmp.eq.s32.totalorder %s23, 0
      %p114 = por %p112, %p113
      %p115 = scmp.ne.s32.totalorder %s101, %s102
      %p116 = scmp.eq.s32.totalorder %s24, 1
      %p117 = por %p115, %p116
      %p119 = scmp.ne.s32.totalorder %s102, %s118
      %p120 = scmp.eq.s32.totalorder %s24, 0
      %p121 = por %p119, %p120
      %s122 = ssub.s32 %s25, %s37
      %s123 = ssub.s32 %s26, %s33
      %s124 = sor.u32 %s122, %s123
      %p125 = scmp.eq.s32.totalorder %s124, 0
      %s127 = sadd.s32 %s126, 1
      %s128 = scalar_select %p125, %s126, %s127
      %p131 = pneg %p125
      %p132 = scmp.eq.s32.totalorder %s18, 1
      %p133 = por %p131, %p132
      %p134 = scmp.ne.s32.totalorder %s126, %s129
      %p135 = scmp.eq.s32.totalorder %s18, 0
      %p136 = por %p134, %p135
      %p137 = scmp.ne.s32.totalorder %s126, %s129
      %p138 = scmp.eq.s32.totalorder %s23, 1
      %p139 = por %p137, %p138
      %p140 = scmp.ne.s32.totalorder %s129, %s130
      %p141 = scmp.eq.s32.totalorder %s23, 0
      %p142 = por %p140, %p141
      %p143 = scmp.ne.s32.totalorder %s129, %s130
      %p144 = scmp.eq.s32.totalorder %s24, 1
      %p145 = por %p143, %p144
      %p147 = scmp.ne.s32.totalorder %s130, %s146
      %p148 = scmp.eq.s32.totalorder %s24, 0
      %p149 = por %p147, %p148
      %s150 = ssub.s32 %s25, %s37
      %s151 = ssub.s32 %s26, %s33
      %s152 = sor.u32 %s150, %s151
      %p153 = scmp.eq.s32.totalorder %s152, 0
      %s155 = sadd.s32 %s154, 1
      %s156 = scalar_select %p153, %s154, %s155
      %p159 = pneg %p153
      %p160 = scmp.eq.s32.totalorder %s18, 1
      %p161 = por %p159, %p160
      %p162 = scmp.ne.s32.totalorder %s154, %s157
      %p163 = scmp.eq.s32.totalorder %s18, 0
      %p164 = por %p162, %p163
      %p165 = scmp.ne.s32.totalorder %s154, %s157
      %p166 = scmp.eq.s32.totalorder %s23, 1
      %p167 = por %p165, %p166
      %p168 = scmp.ne.s32.totalorder %s157, %s158
      %p169 = scmp.eq.s32.totalorder %s23, 0
      %p170 = por %p168, %p169
      %p171 = scmp.ne.s32.totalorder %s157, %s158
      %p172 = scmp.eq.s32.totalorder %s24, 1
      %p173 = por %p171, %p172
      %p175 = scmp.ne.s32.totalorder %s158, %s174
      %p176 = scmp.eq.s32.totalorder %s24, 0
      %p177 = por %p175, %p176
      %s178 = ssub.s32 %s25, %s37
      %s179 = ssub.s32 %s26, %s33
      %s180 = sor.u32 %s178, %s179
      %p181 = scmp.eq.s32.totalorder %s180, 0
      %s183 = sadd.s32 %s182, 1
      %s184 = scalar_select %p181, %s182, %s183
      %p187 = pneg %p181
      %p188 = scmp.eq.s32.totalorder %s18, 1
      %p189 = por %p187, %p188
      %p190 = scmp.ne.s32.totalorder %s182, %s185
      %p191 = scmp.eq.s32.totalorder %s18, 0
      %p192 = por %p190, %p191
      %p193 = scmp.ne.s32.totalorder %s182, %s185
      %p194 = scmp.eq.s32.totalorder %s23, 1
      %p195 = por %p193, %p194
      %p196 = scmp.ne.s32.totalorder %s185, %s186
      %p197 = scmp.eq.s32.totalorder %s23, 0
      %p198 = por %p196, %p197
      %p199 = scmp.ne.s32.totalorder %s185, %s186
      %p200 = scmp.eq.s32.totalorder %s24, 1
      %p201 = por %p199, %p200
      %p203 = scmp.ne.s32.totalorder %s186, %s202
      %p204 = scmp.eq.s32.totalorder %s24, 0
      %p205 = por %p203, %p204
      %s206 = ssub.s32 %s25, %s37
      %s207 = ssub.s32 %s26, %s33
      %s208 = sor.u32 %s206, %s207
      %p209 = scmp.eq.s32.totalorder %s208, 0
      %s211 = sadd.s32 %s210, 1
      %s212 = scalar_select %p209, %s210, %s211
      %p215 = pneg %p209
      %p216 = scmp.eq.s32.totalorder %s18, 1
      %p217 = por %p215, %p216
      %p218 = scmp.ne.s32.totalorder %s210, %s213
      %p219 = scmp.eq.s32.totalorder %s18, 0
      %p220 = por %p218, %p219
      %p221 = scmp.ne.s32.totalorder %s210, %s213
      %p222 = scmp.eq.s32.totalorder %s23, 1
      %p223 = por %p221, %p222
      %p224 = scmp.ne.s32.totalorder %s213, %s214
      %p225 = scmp.eq.s32.totalorder %s23, 0
      %p226 = por %p224, %p225
      %p227 = scmp.ne.s32.totalorder %s213, %s214
      %p228 = scmp.eq.s32.totalorder %s24, 1
      %p229 = por %p227, %p228
      %p231 = scmp.ne.s32.totalorder %s214, %s230
      %p232 = scmp.eq.s32.totalorder %s24, 0
      %p233 = por %p231, %p232
      %p234 = scmp.le.s32.totalorder 1, %s18
      %p235 = scmp.lt.s32.totalorder %s18, 3
      %p236 = pnand %p234, %p235
      %p237 = pneg %p236
      // Predicated region
      $region9: #{pizza_segment_effect.3} parent=5 // pred_check
        _
      $region10: #{pizza_segment_effect.3} parent=5 // pred_check_branch
        %239 = sbr.rel (%p236) target = $region12
      $region11: #{pizza_segment_effect.3} parent=5 // pred_region
        %s240 = ssub.s32 %s18, 1
      $region12: #{pizza_segment_effect.3} parent=5 // pred_fallthru
        _
      %p241 = scmp.lt.s32.totalorder %s18, 2
      // Predicated region
      $region13: #{pizza_segment_effect.3} parent=5 // pred_check
        %p242 = pneg %p241
      $region14: #{pizza_segment_effect.3} parent=5 // pred_check_branch
        %244 = sbr.rel (%p242) target = $region16
      $region15: #{pizza_segment_effect.3} parent=5 // pred_region
        // Predicated region
        $region17: #{pizza_segment_effect.3} parent=15 // pred_check
          %p245 = pneg %p52
        $region18: #{pizza_segment_effect.3} parent=15 // pred_check_branch
          %247 = sbr.rel (%p245) target = $region20
        $region19: #{pizza_segment_effect.3} parent=15 // pred_region
          %s248 = sand.u32 %s42, 1
          %s249 = scalar_lea.sflag [#allocation3], %s248
          %s250 = sand.u32 %s42, 1
          %s251 = smul.addr %s250, 24
          %s252 = scalar_lea.vmem [#allocation2], %s251
          %254 = vsyncadd %s249, 0
          %s255 = sadd.s32 %s26, %s25
          %s256 = smul.addr %s255, 8
          %s257 = scalar_lea.hbm %s0, %s256
          %s258 = sshll.u32 %s257, 4
          %s259 = int_to_ptr.hbm [resolvable:$true] %s258
          %s260 = sshll.u32 %s252, 4
          %s261 = int_to_ptr.vmem [resolvable:$true] %s260
          %266 = dma.hbm_to_vmem [thread:$0]  %s259, 384, %s261, %s249, 256, 128, 8
        $region20: #{pizza_segment_effect.3} parent=15 // pred_fallthru
          _
        // Predicated region
        $region21: #{pizza_segment_effect.3} parent=15 // pred_check
          %p267 = pneg %p80
        $region22: #{pizza_segment_effect.3} parent=15 // pred_check_branch
          %269 = sbr.rel (%p267) target = $region24
        $region23: #{pizza_segment_effect.3} parent=15 // pred_region
          %p270 = scmp.lt.s32.totalorder %s25, 1
          %s271 = scalar_select %p270, %s25, 1
          %p272 = scmp.lt.s32.totalorder %s26, 0
          %s273 = scalar_select %p272, %s26, 0
          %s274 = sadd.s32 %s273, %s271
          %s275 = smul.addr %s274, 8
          %s276 = scalar_lea.vmem %s1, %s275
        $region24: #{pizza_segment_effect.3} parent=15 // pred_fallthru
          _
        // Predicated region
        $region25: #{pizza_segment_effect.3} parent=15 // pred_check
          %p277 = pneg %p108
        $region26: #{pizza_segment_effect.3} parent=15 // pred_check_branch
          %279 = sbr.rel (%p277) target = $region28
        $region27: #{pizza_segment_effect.3} parent=15 // pred_region
          %p280 = scmp.lt.s32.totalorder %s25, 1
          %s281 = scalar_select %p280, %s25, 1
          %p282 = scmp.lt.s32.totalorder %s26, 0
          %s283 = scalar_select %p282, %s26, 0
          %s284 = sadd.s32 %s283, %s281
          %s285 = smul.addr %s284, 8
          %s286 = scalar_lea.vmem %s2, %s285
        $region28: #{pizza_segment_effect.3} parent=15 // pred_fallthru
          _
        // Predicated region
        $region29: #{pizza_segment_effect.3} parent=15 // pred_check
          %p287 = pneg %p136
        $region30: #{pizza_segment_effect.3} parent=15 // pred_check_branch
          %289 = sbr.rel (%p287) target = $region32
        $region31: #{pizza_segment_effect.3} parent=15 // pred_region
          %p290 = scmp.lt.s32.totalorder %s25, 1
          %s291 = scalar_select %p290, %s25, 1
          %p292 = scmp.lt.s32.totalorder %s26, 0
          %s293 = scalar_select %p292, %s26, 0
          %s294 = sadd.s32 %s293, %s291
          %s295 = smul.addr %s294, 8
          %s296 = scalar_lea.vmem %s3, %s295
        $region32: #{pizza_segment_effect.3} parent=15 // pred_fallthru
          _
        // Predicated region
        $region33: #{pizza_segment_effect.3} parent=15 // pred_check
          %p297 = pneg %p164
        $region34: #{pizza_segment_effect.3} parent=15 // pred_check_branch
          %299 = sbr.rel (%p297) target = $region36
        $region35: #{pizza_segment_effect.3} parent=15 // pred_region
          %p300 = scmp.lt.s32.totalorder %s25, 1
          %s301 = scalar_select %p300, %s25, 1
          %p302 = scmp.lt.s32.totalorder %s26, 0
          %s303 = scalar_select %p302, %s26, 0
          %s304 = sadd.s32 %s303, %s301
          %s305 = smul.addr %s304, 8
          %s306 = scalar_lea.vmem %s4, %s305
        $region36: #{pizza_segment_effect.3} parent=15 // pred_fallthru
          _
        // Predicated region
        $region37: #{pizza_segment_effect.3} parent=15 // pred_check
          %p307 = pneg %p192
        $region38: #{pizza_segment_effect.3} parent=15 // pred_check_branch
          %309 = sbr.rel (%p307) target = $region40
        $region39: #{pizza_segment_effect.3} parent=15 // pred_region
          %p310 = scmp.lt.s32.totalorder %s25, 1
          %s311 = scalar_select %p310, %s25, 1
          %p312 = scmp.lt.s32.totalorder %s26, 0
          %s313 = scalar_select %p312, %s26, 0
          %s314 = sadd.s32 %s313, %s311
          %s315 = smul.addr %s314, 8
          %s316 = scalar_lea.vmem %s5, %s315
        $region40: #{pizza_segment_effect.3} parent=15 // pred_fallthru
          _
      $region16: #{pizza_segment_effect.3} parent=5 // pred_fallthru
        _
      %p317 = scmp.le.s32.totalorder 1, %s18
      %p318 = scmp.lt.s32.totalorder %s18, 3
      %p319 = pnand %p317, %p318
      %p320 = pneg %p319
      // Predicated region
      $region41: #{pizza_segment_effect.3} parent=5 // pred_check
        _
      $region42: #{pizza_segment_effect.3} parent=5 // pred_check_branch
        %322 = sbr.rel (%p319) target = $region44
      $region43: #{pizza_segment_effect.3} parent=5 // pred_region
        %s323 = ssub.s32 %s18, 1
        %s324 = sand.u32 %s45, 1
        %s325 = scalar_lea.sflag [#allocation3], %s324
        %s326 = sand.u32 %s45, 1
        %s327 = smul.addr %s326, 24
        %s328 = scalar_lea.vmem [#allocation2], %s327
        // Predicated region
        $region45: #{pizza_segment_effect.3} parent=43 // pred_check
          %p329 = pneg %p58
        $region46: #{pizza_segment_effect.3} parent=43 // pred_check_branch
          %331 = sbr.rel (%p329) target = $region48
        $region47: #{pizza_segment_effect.3} parent=43 // pred_region
          %333 = dma.done %s325, 384
        $region48: #{pizza_segment_effect.3} parent=43 // pred_fallthru
          _
        %s334 = sand.u32 %s45, 1
        %s335 = scalar_lea.sflag [#allocation3], %s334
        %s336 = sand.u32 %s45, 1
        %s337 = smul.addr %s336, 24
        %s338 = scalar_lea.vmem [#allocation2], %s337
        %p339 = pneg %p58
        %p340 = pneg %p55
        %p341 = scmp.lt.s32.totalorder %s27, 1
        %s342 = scalar_select %p341, %s27, 1
        %p343 = scmp.lt.s32.totalorder %s28, 0
        %s344 = scalar_select %p343, %s28, 0
        %s345 = sadd.s32 %s344, %s342
        %s346 = smul.addr %s345, 8
        %s347 = scalar_lea.vmem %s1, %s346
        %p348 = pneg %p86
        %p349 = pneg %p83
        %p350 = scmp.lt.s32.totalorder %s27, 1
        %s351 = scalar_select %p350, %s27, 1
        %p352 = scmp.lt.s32.totalorder %s28, 0
        %s353 = scalar_select %p352, %s28, 0
        %s354 = sadd.s32 %s353, %s351
        %s355 = smul.addr %s354, 8
        %s356 = scalar_lea.vmem %s2, %s355
        %p357 = pneg %p114
        %p358 = pneg %p111
        %p359 = scmp.lt.s32.totalorder %s27, 1
        %s360 = scalar_select %p359, %s27, 1
        %p361 = scmp.lt.s32.totalorder %s28, 0
        %s362 = scalar_select %p361, %s28, 0
        %s363 = sadd.s32 %s362, %s360
        %s364 = smul.addr %s363, 8
        %s365 = scalar_lea.vmem %s3, %s364
        %p366 = pneg %p142
        %p367 = pneg %p139
        %p368 = scmp.lt.s32.totalorder %s27, 1
        %s369 = scalar_select %p368, %s27, 1
        %p370 = scmp.lt.s32.totalorder %s28, 0
        %s371 = scalar_select %p370, %s28, 0
        %s372 = sadd.s32 %s371, %s369
        %s373 = smul.addr %s372, 8
        %s374 = scalar_lea.vmem %s4, %s373
        %p375 = pneg %p170
        %p376 = pneg %p167
        %p377 = scmp.lt.s32.totalorder %s27, 1
        %s378 = scalar_select %p377, %s27, 1
        %p379 = scmp.lt.s32.totalorder %s28, 0
        %s380 = scalar_select %p379, %s28, 0
        %s381 = sadd.s32 %s380, %s378
        %s382 = smul.addr %s381, 8
        %s383 = scalar_lea.vmem %s5, %s382
        %p384 = pneg %p198
        %p385 = pneg %p195
        %p386 = pneg %p226
        %p387 = pneg %p223
        %s388 = sand.u32 %s213, 1
        %s389 = scalar_lea.sflag [#allocation4], %s388
        %s390 = sand.u32 %s213, 1
        %s391 = smul.addr %s390, 24
        %s392 = scalar_lea.vmem [#allocation5], %s391
        %p393 = scmp.lt.s32.totalorder %s27, 1
        %s394 = scalar_select %p393, %s27, 1
        %p395 = scmp.lt.s32.totalorder %s28, 0
        %s396 = scalar_select %p395, %s28, 0
        %s397 = sadd.s32 %s396, %s394
        %s398 = smul.addr %s397, 8
        %s399 = scalar_lea.vmem %s1, %s398
        %p400 = scmp.lt.s32.totalorder %s27, 1
        %s401 = scalar_select %p400, %s27, 1
        %p402 = scmp.lt.s32.totalorder %s28, 0
        %s403 = scalar_select %p402, %s28, 0
        %s404 = sadd.s32 %s403, %s401
        %s405 = smul.addr %s404, 8
        %s406 = scalar_lea.vmem %s2, %s405
        %p407 = scmp.lt.s32.totalorder %s27, 1
        %s408 = scalar_select %p407, %s27, 1
        %p409 = scmp.lt.s32.totalorder %s28, 0
        %s410 = scalar_select %p409, %s28, 0
        %s411 = sadd.s32 %s410, %s408
        %s412 = smul.addr %s411, 8
        %s413 = scalar_lea.vmem %s3, %s412
        %p414 = scmp.lt.s32.totalorder %s27, 1
        %s415 = scalar_select %p414, %s27, 1
        %p416 = scmp.lt.s32.totalorder %s28, 0
        %s417 = scalar_select %p416, %s28, 0
        %s418 = sadd.s32 %s417, %s415
        %s419 = smul.addr %s418, 8
        %s420 = scalar_lea.vmem %s4, %s419
        %p421 = scmp.lt.s32.totalorder %s27, 1
        %s422 = scalar_select %p421, %s27, 1
        %p423 = scmp.lt.s32.totalorder %s28, 0
        %s424 = scalar_select %p423, %s28, 0
        %s425 = sadd.s32 %s424, %s422
        %s426 = smul.addr %s425, 8
        %s427 = scalar_lea.vmem %s5, %s426
        %s428 = smul.u32 %s27, 8
        %s429 = smul.u32 %s28, 16
        %v430 = vlaneseq
        %v431 = vshrl.u32 %v430, 7
        %v432 = vstv %s428
        %v433 = vadd.s32 %v431, %v432
        %v434 = vcvt.s32.f32 %v433
        %v435 = vlaneseq
        %v436 = vand.u32 %v435, 127
        %v437 = vstv %s429
        %v438 = vadd.s32 %v436, %v437
        %v439 = vcvt.s32.f32 %v438
        %v440 = vmul.f32 %v434, 0.13333334
        %v441 = vsub.f32 %v440, 1.0
        %v442 = vmul.f32 %v439, 0.13333334
        %v443 = vsub.f32 %v442, 1.0
        %v444 = vmul.f32 %v443, %v443
        %v445 = vmul.f32 %v441, %v441
        %v446 = vadd.f32 %v444, %v445
        %v447 = vrsqrt.pop %v446
        %v448 = vmul.f32 %v447, %v446
        %v449 = vmul.f32 %v448, %v447
        %v450 = vmul.f32 0.5, %v449
        %v451 = vsub.f32 1.5, %v450
        %v452 = vmul.f32 %v447, %v451
        %v453 = vmul.f32 %v446, %v452
        %vm454 = vcmp.eq.f32.partialorder %v446, inf
        %v455 = vsel %vm454, %v446, %v453
        %vm456 = vcmp.eq.f32.partialorder %v446, 0.0
        %v457 = vand.u32 %v446, 2147483648
        %v458 = vsel %vm456, %v457, %v455
        %vm459 = vcmp.le.f32.partialorder %v458, 0.8
        %v460 = vmul.f32 %v443, 0.0
        %v461 = vsub.f32 %v441, %v460
        %vm462 = vcmp.ge.f32.partialorder %v461, 0.0
        %v463 = vmul.f32 %v441, 0.5
        %v464 = vmul.f32 %v443, 0.8660254
        %v465 = vsub.f32 %v463, %v464
        %vm466 = vcmp.ge.f32.partialorder %v465, 0.0
        %v467 = vmul.f32 %v441, -0.5
        %v468 = vsub.f32 %v467, %v464
        %vm469 = vcmp.ge.f32.partialorder %v468, 0.0
        %v470 = vmul.f32 %v441, -1.0
        %v471 = vmul.f32 %v443, 1.2246469e-16
        %v472 = vsub.f32 %v470, %v471
        %vm473 = vcmp.ge.f32.partialorder %v472, 0.0
        %v474 = vmul.f32 %v443, -0.8660254
        %v475 = vsub.f32 %v467, %v474
        %vm476 = vcmp.ge.f32.partialorder %v475, 0.0
        %v477 = vsub.f32 %v463, %v474
        %vm478 = vcmp.ge.f32.partialorder %v477, 0.0
        %v479 = vld [vmem:[%s399] sm:$0xff]
        %v480 = vld [vmem:[%s406] sm:$0xff]
        %v481 = vld [vmem:[%s413] sm:$0xff]
        %vm482 = vmxor %vm466, 1
        %vm483 = vmand %vm462, %vm482
        %vm484 = vmand %vm483, %vm459
        %vm485 = vcmp.eq.f32.partialorder %v446, 0.0
        %vm486 = vmand %vm459, %vm485
        %vm487 = vmor %vm484, %vm486
        %v488 = vmul.f32 %v481, 0.405
        %v489 = vsel %vm487, %v488, 0.0
        %v490 = vsel %vm487, 0.405, 0.0
        %vm491 = vmxor %vm473, 1
        %vm492 = vmand %vm469, %vm491
        %vm493 = vmand %vm492, %vm459
        %vm494 = vcmp.lt.f32.partialorder %v443, -0.3
        %v495 = vmul.f32 %v479, 1.35
        %v496 = vsel %vm494, %v495, %v479
        %v497 = vmul.f32 %v496, 0.27
        %v498 = vsel %vm493, %v497, %v489
        %v499 = vsel %vm493, 0.27, %v490
        %vm500 = vmor %vm487, %vm493
        %vm501 = vmxor %vm476, 1
        %vm502 = vmand %vm473, %vm501
        %vm503 = vmand %vm502, %vm459
        %v504 = vmul.f32 %v480, 0.135
        %v505 = vsel %vm503, %v504, %v498
        %v506 = vsel %vm503, 0.135, %v499
        %vm507 = vmor %vm500, %vm503
        %vm508 = vmxor %vm478, 1
        %vm509 = vmand %vm476, %vm508
        %vm510 = vmand %vm509, %vm459
        %v511 = vmul.f32 %v481, 0.3375
        %v512 = vsel %vm510, %v511, %v505
        %v513 = vsel %vm510, 0.3375, %v506
        %vm514 = vmor %vm507, %vm510
        %vm515 = vmor %vm500, %vm510
        %vm516 = vmxor %vm462, 1
        %vm517 = vmand %vm478, %vm516
        %vm518 = vmand %vm517, %vm459
        %v519 = vmul.f32 %v480, 0.225
        %v520 = vsel %vm518, %v519, %v512
        %v521 = vsel %vm518, 0.225, %v513
        %vm522 = vmor %vm514, %vm518
        %vm523 = vmor %vm515, %vm518
        %v524 = vld [vmem:[%s328] sm:$0xff]
        %s525 = scalar_lea.vmem %s328, 8 [#allocation2]
        %v526 = vld [vmem:[%s525] sm:$0xff]
        %s527 = scalar_lea.vmem %s328, 16 [#allocation2]
        %v528 = vld [vmem:[%s527] sm:$0xff]
        %vm529 = vcmp.gt.f32.partialorder %v520, 0.2
        %vm530 = vcmp.le.f32.partialorder %v520, 0.25
        %vm531 = vmand %vm529, %vm530
        %v532 = vmul.f32 %v521, 0.25
        %v533 = vsub.f32 0.65, %v524
        %v534 = vmul.f32 %v532, %v533
        %v535 = vadd.f32 %v524, %v534
        %v536 = vsel %vm531, %v535, %v524
        %v537 = vsub.f32 0.4, %v526
        %v538 = vmul.f32 %v532, %v537
        %v539 = vadd.f32 %v526, %v538
        %v540 = vsel %vm531, %v539, %v526
        %v541 = vsub.f32 0.25, %v528
        %v542 = vmul.f32 %v532, %v541
        %v543 = vadd.f32 %v528, %v542
        %v544 = vsel %vm531, %v543, %v528
        %vm545 = vcmp.gt.f32.partialorder %v520, 0.4
        %vm546 = vcmp.le.f32.partialorder %v520, 0.5
        %vm547 = vmand %vm545, %vm546
        %v548 = vmul.f32 %v521, 0.5
        %v549 = vsub.f32 0.35, %v524
        %v550 = vmul.f32 %v548, %v549
        %v551 = vadd.f32 %v524, %v550
        %v552 = vsel %vm547, %v551, %v536
        %v553 = vsub.f32 0.2, %v526
        %v554 = vmul.f32 %v548, %v553
        %v555 = vadd.f32 %v526, %v554
        %v556 = vsel %vm547, %v555, %v540
        %v557 = vsub.f32 0.15, %v528
        %v558 = vmul.f32 %v548, %v557
        %v559 = vadd.f32 %v528, %v558
        %v560 = vsel %vm547, %v559, %v544
        %vm561 = vcmp.gt.f32.partialorder %v520, 0.6
        %vm562 = vcmp.le.f32.partialorder %v520, 0.75
        %vm563 = vmand %vm561, %vm562
        %v564 = vmul.f32 %v521, 0.75
        %v565 = vmul.f32 %v564, %v549
        %v566 = vadd.f32 %v524, %v565
        %v567 = vsel %vm563, %v566, %v552
        %v568 = vmul.f32 %v564, %v553
        %v569 = vadd.f32 %v526, %v568
        %v570 = vsel %vm563, %v569, %v556
        %v571 = vmul.f32 %v564, %v557
        %v572 = vadd.f32 %v528, %v571
        %v573 = vsel %vm563, %v572, %v560
        %vm574 = vcmp.gt.f32.partialorder %v520, 0.8
        %vm575 = vcmp.le.f32.partialorder %v520, 1.0
        %vm576 = vmand %vm574, %vm575
        %v577 = vsub.f32 0.15, %v524
        %v578 = vmul.f32 %v521, %v577
        %v579 = vadd.f32 %v524, %v578
        %v580 = vsel %vm576, %v579, %v567
        %v581 = vsub.f32 0.1, %v526
        %v582 = vmul.f32 %v521, %v581
        %v583 = vadd.f32 %v526, %v582
        %v584 = vsel %vm576, %v583, %v570
        %v585 = vsub.f32 0.1, %v528
        %v586 = vmul.f32 %v521, %v585
        %v587 = vadd.f32 %v528, %v586
        %v588 = vsel %vm576, %v587, %v573
        %v589 = vsel %vm574, 0.05, %v580
        %v590 = vsel %vm574, 0.05, %v584
        %v591 = vsel %vm574, 0.05, %v588
        %v592 = vld [vmem:[%s420] sm:$0xff]
        %v593 = vmul.f32 %v592, 0.05
        %v594 = vadd.f32 %v593, 1.0
        %vm595 = vcmp.gt.f32.partialorder %v520, 0.3
        %vm596 = vmand %vm595, %vm523
        %v597 = vmul.f32 %v589, %v594
        %v598 = vsel %vm596, %v597, %v589
        %v599 = vmul.f32 %v590, %v594
        %v600 = vsel %vm596, %v599, %v590
        %v601 = vmul.f32 %v591, %v594
        %v602 = vsel %vm596, %v601, %v591
        %v603 = vmax.f32 %v598, 0.0
        %v604 = vmin.f32 %v603, 1.0
        %v605 = vsel %vm522, %v604, %v524
        %v606 = vmax.f32 %v600, 0.0
        %v607 = vmin.f32 %v606, 1.0
        %v608 = vsel %vm522, %v607, %v526
        %v609 = vmax.f32 %v602, 0.0
        %v610 = vmin.f32 %v609, 1.0
        %v611 = vsel %vm522, %v610, %v528
        %v612 = vld [vmem:[%s427] sm:$0xff]
        %v613 = vsub.f32 1.0, %v612
        %v614 = vmul.f32 %v458, -2.0
        %v615 = vmul.f32 %v614, 1.442695
        %v616 = vpow.pop %v615
        %v617 = vmul.f32 %v616, 0.5
        %v618 = vadd.f32 %v617, 0.5
        %v619 = vmul.f32 %v618, 0.075
        %v620 = vadd.f32 %v619, 1.0
        %v621 = vmul.f32 %v619, 0.3
        %v622 = vadd.f32 %v621, 1.0
        %v623 = vmul.f32 %v619, 0.2
        %v624 = vsub.f32 1.0, %v623
        %v625 = vsub.f32 %v443, 0.1
        %v626 = vsub.f32 %v441, -0.2
        %v627 = vmul.f32 %v625, %v625
        %v628 = vmul.f32 %v626, %v626
        %v629 = vadd.f32 %v627, %v628
        %v630 = vmul.f32 %v629, -1.3888888
        %v631 = vmul.f32 %v630, 1.442695
        %v632 = vpow.pop %v631
        %v633 = vmul.f32 %v632, 0.13125
        %v634 = vsub.f32 1.0, %v633
        %v635 = vadd.f32 %v633, 1.0
        %v636 = vmul.f32 %v605, %v613
        %v637 = vadd.f32 %v636, %v612
        %v638 = vmul.f32 %v637, %v620
        %v639 = vmax.f32 %v638, 0.0
        %v640 = vmin.f32 %v639, 1.0
        %v641 = vmul.f32 %v640, %v634
        %v642 = vmul.f32 %v640, 1.05
        %v643 = vmul.f32 %v642, %v635
        %v644 = vmin.f32 %v643, 1.0
        %v645 = vadd.f32 %v641, %v644
        %v646 = vmax.f32 %v645, 0.0
        %v647 = vmin.f32 %v646, 1.0
        %v648 = vmul.f32 %v608, %v613
        %v649 = vadd.f32 %v648, %v612
        %v650 = vmul.f32 %v649, %v622
        %v651 = vmax.f32 %v650, 0.0
        %v652 = vmin.f32 %v651, 1.0
        %v653 = vmul.f32 %v652, %v634
        %v654 = vmul.f32 %v652, 1.03
        %v655 = vmul.f32 %v654, %v635
        %v656 = vmin.f32 %v655, 1.0
        %v657 = vadd.f32 %v653, %v656
        %v658 = vmax.f32 %v657, 0.0
        %v659 = vmin.f32 %v658, 1.0
        %v660 = vmul.f32 %v611, %v613
        %v661 = vmul.f32 %v612, 1.05
        %v662 = vadd.f32 %v660, %v661
        %v663 = vmul.f32 %v662, %v624
        %v664 = vmax.f32 %v663, 0.0
        %v665 = vmin.f32 %v664, 1.0
        %v666 = vmul.f32 %v665, %v634
        %v667 = vmul.f32 %v665, %v635
        %v668 = vmin.f32 %v667, 1.0
        %v669 = vadd.f32 %v666, %v668
        %v670 = vmax.f32 %v669, 0.0
        %v671 = vmin.f32 %v670, 1.0
        %v672 = vsel %vm515, %v647, %v605
        %vm673 = vcmask 130048
        %674 = vst.msk [vmem:[%s392] sm:$0xff] %vm673, %v672
        %v675 = vsel %vm515, %v659, %v608
        %s676 = scalar_lea.vmem %s392, 8 [#allocation5]
        %677 = vst.msk [vmem:[%s676] sm:$0xff] %vm673, %v675
        %v678 = vsel %vm515, %v671, %v611
        %s679 = scalar_lea.vmem %s392, 16 [#allocation5]
        %680 = vst.msk [vmem:[%s679] sm:$0xff] %vm673, %v678
        %s681 = sand.u32 %s213, 1
        %s682 = scalar_lea.sflag [#allocation4], %s681
        %s683 = sand.u32 %s213, 1
        %s684 = smul.addr %s683, 24
        %s685 = scalar_lea.vmem [#allocation5], %s684
        // Predicated region
        $region49: #{pizza_segment_effect.3} parent=43 // pred_check
          %p686 = pneg %p223
        $region50: #{pizza_segment_effect.3} parent=43 // pred_check_branch
          %688 = sbr.rel (%p686) target = $region52
        $region51: #{pizza_segment_effect.3} parent=43 // pred_region
          %690 = vsyncadd %s682, 0
          %s691 = sadd.s32 %s28, %s27
          %s692 = smul.addr %s691, 8
          %s693 = scalar_lea.hbm %s6, %s692
          %s694 = sshll.u32 %s685, 4
          %s695 = int_to_ptr.vmem [resolvable:$true] %s694
          %s696 = sshll.u32 %s693, 4
          %s697 = int_to_ptr.hbm [resolvable:$true] %s696
          %702 = dma.vmem_to_hbm [thread:$0]  %s695, 384, %s697, %s682, 128, 256, 8
        $region52: #{pizza_segment_effect.3} parent=43 // pred_fallthru
          _
      $region44: #{pizza_segment_effect.3} parent=5 // pred_fallthru
        _
      %p703 = scmp.le.s32.totalorder 2, %s18
      // Predicated region
      $region53: #{pizza_segment_effect.3} parent=5 // pred_check
        %p704 = pneg %p703
      $region54: #{pizza_segment_effect.3} parent=5 // pred_check_branch
        %706 = sbr.rel (%p704) target = $region56
      $region55: #{pizza_segment_effect.3} parent=5 // pred_region
        %s707 = ssub.s32 %s18, 2
        // Predicated region
        $region57: #{pizza_segment_effect.3} parent=55 // pred_check
          %p708 = pneg %p229
        $region58: #{pizza_segment_effect.3} parent=55 // pred_check_branch
          %710 = sbr.rel (%p708) target = $region60
        $region59: #{pizza_segment_effect.3} parent=55 // pred_region
          %s711 = sand.u32 %s214, 1
          %s712 = scalar_lea.sflag [#allocation4], %s711
          %s713 = sand.u32 %s214, 1
          %s714 = smul.addr %s713, 24
          %s715 = scalar_lea.vmem [#allocation5], %s714
          %717 = dma.done %s712, 384
        $region60: #{pizza_segment_effect.3} parent=55 // pred_fallthru
          _
      $region56: #{pizza_segment_effect.3} parent=5 // pred_fallthru
        _
    $region6: #{pizza_segment_effect.3} parent=1 // loop_footer
      %s22 = sadd.s32 1, %s18
    $region7: #{pizza_segment_effect.3} parent=1 // loop_footer_branch
      %17 = sbr.rel target = $region3
    $region8: #{pizza_segment_effect.3} parent=1 // loop_exit
      _
    %718 = vsyncpa [#allocation3], 1
    %s719 = scalar_lea.sflag [#allocation3], 1
    %720 = vsyncpa %s719, 1
    %721 = vsyncpa [#allocation4], 1
    %s722 = scalar_lea.sflag [#allocation4], 1
    %723 = vsyncpa %s722, 1

</llo_original>
